<compile_context>
chip_gen: v5e
topology: v5e:2x2
jax: 0.10.0
libtpu: 0.0.40
codegen_flags: <defaults>
</compile_context>

<pallas_src>
import jax
import jax.numpy as jnp
import numpy as np
from jax import lax
from jax.experimental import pallas as pl
from jax.experimental.pallas import tpu as pltpu


def _round_up(x, m):
    return (x + m - 1) // m * m


# ----------------------------------------------------------------------------
# Pallas kernel: one (Coutp, tile_m) output slab = W_T @ patches_T + BN + ReLU
# ----------------------------------------------------------------------------
def _matmul_bn_relu_kernel(p_ref, w_ref, s_ref, b_ref, o_ref):
    """p_ref: (Kp, tile_m) bf16  transposed im2col patches (lane-dense feed)
       w_ref: (Coutp, Kp)  bf16  folded conv weights (transposed)
       s_ref: (Coutp, 1)   f32   folded BN scale
       b_ref: (Coutp, 1)   f32   folded BN bias
       o_ref: (Coutp, tile_m)    lane-dense output slab
    """
    acc = jnp.dot(w_ref[...], p_ref[...],
                  preferred_element_type=jnp.float32)        # (Coutp, tile_m) f32
    y = jnp.maximum(acc * s_ref[...] + b_ref[...], 0.0)      # fused BN + ReLU
    o_ref[...] = y.astype(o_ref.dtype)                       # single lane-dense store


def _pick_tile_m(m, max_tile=4096):
    """Tile of the M = N*Ho*Wo axis: 128-multiple, large (few grid steps), but
    >=2 grid steps when there is enough work (v7x megacore sharding)."""
    m128 = _round_up(m, 128)
    if m128 <= 128:
        return 128
    if m128 <= max_tile:
        return max(128, _round_up((m128 + 1) // 2, 128))
    return max_tile


def _vmem_limit_bytes(block_nbytes):
    """Scoped-VMEM request sized from the actual blocks (double-buffered) with
    headroom; capped at 64 MiB so it is also valid on v7x."""
    need = 2 * sum(block_nbytes) + (2 << 20)
    return int(min(64 * 1024 * 1024, max(need, 8 * 1024 * 1024)))


# ----------------------------------------------------------------------------
# One conv + folded-BN + ReLU layer
# ----------------------------------------------------------------------------
def conv_bn_relu(x, w, scale, bias, *, stride, padding, out_dtype,
                 compute_dtype=jnp.bfloat16, max_tile_m=4096):
    """Conv2d(no bias) + folded BatchNorm + ReLU.  x: (N,H,W,Cin), w: HWIO."""
    N, H, W, Cin = x.shape
    KH, KW, _, Cout = w.shape
    Ho = (H + 2 * padding - KH) // stride + 1
    Wo = (W + 2 * padding - KW) // stride + 1
    K = KH * KW * Cin
    M = N * Ho * Wo

    # ---- wrapper-side im2col (handles stride directly, K ordered (kh,kw,cin)),
    # stored transposed as (K, M) so MXU operands and output are lane-dense.
    x_pad = jnp.pad(x.astype(compute_dtype),
                    ((0, 0), (padding, padding), (padding, padding), (0, 0)))
    taps = []
    for kh in range(KH):
        for kw in range(KW):
            sl = lax.slice(
                x_pad,
                (0, kh, kw, 0),
                (N, kh + (Ho - 1) * stride + 1, kw + (Wo - 1) * stride + 1, Cin),
                (1, stride, stride, 1))                        # (N, Ho, Wo, Cin)
            taps.append(sl)
    patches = jnp.stack(taps, axis=0)                          # (KH*KW,N,Ho,Wo,Cin)
    patches = patches.transpose(0, 4, 1, 2, 3).reshape(K, M)   # (K, M)

    # ---- pad to vreg/MXU friendly sizes: K -> mult of 128 (unmasked feed),
    # Cout -> mult of 8 (full sublanes), M -> mult of tile_m.
    Kp = _round_up(K, 128)
    Coutp = _round_up(Cout, 8)
    tile_m = _pick_tile_m(M, max_tile_m)
    Mp = _round_up(M, tile_m)
    grid_m = Mp // tile_m

    patches = jnp.pad(patches, ((0, Kp - K), (0, Mp - M)))
    w_t = jnp.pad(w.reshape(K, Cout).T.astype(compute_dtype),
                  ((0, Coutp - Cout), (0, Kp - K)))
    s_col = jnp.pad(scale.reshape(Cout, 1).astype(jnp.float32),
                    ((0, Coutp - Cout), (0, 0)))
    b_col = jnp.pad(bias.reshape(Cout, 1).astype(jnp.float32),
                    ((0, Coutp - Cout), (0, 0)))

    out_itemsize = jnp.dtype(out_dtype).itemsize
    vmem = _vmem_limit_bytes([
        Kp * tile_m * 2,                    # patch block (bf16)
        Coutp * Kp * 2,                     # weight block (bf16)
        2 * Coutp * 4,                      # scale + bias (f32)
        Coutp * tile_m * out_itemsize,      # output block
    ])

    out_t = pl.pallas_call(
        _matmul_bn_relu_kernel,
        out_shape=jax.ShapeDtypeStruct((Coutp, Mp), out_dtype),
        grid=(grid_m,),
        in_specs=[
            # streamed, lane-dense patch tiles
            pl.BlockSpec((Kp, tile_m), lambda i: (0, i)),
            # constant index maps -> fetched once, stay resident across steps
            pl.BlockSpec((Coutp, Kp), lambda i: (0, 0)),
            pl.BlockSpec((Coutp, 1), lambda i: (0, 0)),
            pl.BlockSpec((Coutp, 1), lambda i: (0, 0)),
        ],
        out_specs=pl.BlockSpec((Coutp, tile_m), lambda i: (0, i)),
        compiler_params=pltpu.CompilerParams(
            dimension_semantics=("parallel",),
            vmem_limit_bytes=vmem,
        ),
    )(patches, w_t, s_col, b_col)

    # Drop padding and restore NHWC (pure layout plumbing in the wrapper).
    out = out_t[:Cout, :M].reshape(Cout, N, Ho, Wo).transpose(1, 2, 3, 0)
    return out


# ----------------------------------------------------------------------------
# DLAInitBlock forward
# ----------------------------------------------------------------------------
def dla_init_block(x, params, compute_dtype=jnp.bfloat16):
    # conv7x7_block: k=7, s=1, p=3, BN, ReLU  (in -> mid)
    x = conv_bn_relu(x, params["w1"], params["s1"], params["b1"],
                     stride=1, padding=3, out_dtype=compute_dtype,
                     compute_dtype=compute_dtype)
    # conv3x3_block: k=3, s=1, p=1, BN, ReLU  (mid -> mid)
    x = conv_bn_relu(x, params["w2"], params["s2"], params["b2"],
                     stride=1, padding=1, out_dtype=compute_dtype,
                     compute_dtype=compute_dtype)
    # conv3x3_block: k=3, s=2, p=1, BN, ReLU  (mid -> out)
    x = conv_bn_relu(x, params["w3"], params["s3"], params["b3"],
                     stride=2, padding=1, out_dtype=jnp.float32,
                     compute_dtype=compute_dtype)
    return x


# ----------------------------------------------------------------------------
# Deterministic parameter construction (synthetic, not a checkpoint load)
# ----------------------------------------------------------------------------
def make_params(key, in_channels, out_channels, eps=1e-5):
    mid = out_channels // 2
    keys = jax.random.split(key, 15)

    def conv_w(k, kh, kw, cin, cout):
        return 0.1 * jax.random.normal(k, (kh, kw, cin, cout), jnp.float32)

    def bn(kg, kb, km, kv, c):
        gamma = 1.0 + 0.1 * jax.random.normal(kg, (c,), jnp.float32)
        beta = 0.1 * jax.random.normal(kb, (c,), jnp.float32)
        mean = 0.1 * jax.random.normal(km, (c,), jnp.float32)
        var = jnp.abs(jax.random.normal(kv, (c,), jnp.float32)) + 0.5
        scale = gamma * lax.rsqrt(var + eps)
        bias = beta - mean * scale
        return scale, bias

    w1 = conv_w(keys[0], 7, 7, in_channels, mid)
    s1, b1 = bn(keys[1], keys[2], keys[3], keys[4], mid)
    w2 = conv_w(keys[5], 3, 3, mid, mid)
    s2, b2 = bn(keys[6], keys[7], keys[8], keys[9], mid)
    w3 = conv_w(keys[10], 3, 3, mid, out_channels)
    s3, b3 = bn(keys[11], keys[12], keys[13], keys[14], out_channels)
    return dict(w1=w1, s1=s1, b1=b1, w2=w2, s2=s2, b2=b2, w3=w3, s3=s3, b3=b3)


# ----------------------------------------------------------------------------
# Pure-JAX reference (mirrors the kernel's bf16-in / f32-accumulate precision)
# ----------------------------------------------------------------------------
def reference(x, params, compute_dtype=jnp.bfloat16):
    def block(x, w, s, b, stride, padding, out_dtype):
        xc = x.astype(compute_dtype).astype(jnp.float32)
        wc = w.astype(compute_dtype).astype(jnp.float32)
        y = lax.conv_general_dilated(
            xc, wc, window_strides=(stride, stride),
            padding=[(padding, padding), (padding, padding)],
            dimension_numbers=("NHWC", "HWIO", "NHWC"),
            precision=lax.Precision.HIGHEST)
        return jnp.maximum(y * s + b, 0.0).astype(out_dtype)

    x = block(x, params["w1"], params["s1"], params["b1"], 1, 3, compute_dtype)
    x = block(x, params["w2"], params["s2"], params["b2"], 1, 1, compute_dtype)
    x = block(x, params["w3"], params["s3"], params["b3"], 2, 1, jnp.float32)
    return x


if __name__ == "__main__":
    key = jax.random.PRNGKey(0)
    kx, kp = jax.random.split(key)

    # Small shapes consistent with the module: in_channels=4, out_channels=8.
    N, Cin, H, W = 2, 4, 16, 16
    Cout = 8

    x_nchw = jax.random.normal(kx, (N, Cin, H, W), jnp.float32)
    x = jnp.transpose(x_nchw, (0, 2, 3, 1))  # NCHW -> NHWC

    params = make_params(kp, Cin, Cout)

    fwd = jax.jit(dla_init_block)
    out = jax.block_until_ready(fwd(x, params))

    ref = jax.block_until_ready(jax.jit(reference)(x, params))
    # bf16 storage of activations/weights in both paths -> ~1e-2 level diffs.
    np.testing.assert_allclose(np.asarray(out), np.asarray(ref),
                               rtol=2e-2, atol=2e-2)
    assert out.shape == (N, H // 2, W // 2, Cout)

    print("KERNEL_OK")
</pallas_src>

<mosaic_0001>
module attributes {stable_mosaic.version = 11 : i64} {
  func.func @_matmul_bn_relu_kernel(%arg0: i32, %arg1: memref<256x256xbf16, #tpu.memory_space<vmem>>, %arg2: memref<8x256xbf16, #tpu.memory_space<vmem>>, %arg3: memref<8x1xf32, #tpu.memory_space<vmem>>, %arg4: memref<8x1xf32, #tpu.memory_space<vmem>>, %arg5: memref<8x256xbf16, #tpu.memory_space<vmem>>) attributes {dimension_semantics = [#tpu.dimension_semantics<parallel>], iteration_bounds = array<i64: 2>, scalar_prefetch = 0 : i64, scratch_operands = 0 : i64, tpu.core_type = #tpu.core_type<tc>, window_params = [{transform_indices = @transform_0, window_bounds = array<i64: 256, 256>}, {pipeline_mode = #tpu.pipeline_mode<synchronous>, transform_indices = @transform_1, window_bounds = array<i64: 8, 256>}, {pipeline_mode = #tpu.pipeline_mode<synchronous>, transform_indices = @transform_2, window_bounds = array<i64: 8, 1>}, {pipeline_mode = #tpu.pipeline_mode<synchronous>, transform_indices = @transform_3, window_bounds = array<i64: 8, 1>}, {transform_indices = @transform_4, window_bounds = array<i64: 8, 256>}]} {
    %c0 = arith.constant 0 : index
    %c0_0 = arith.constant 0 : index
    %0 = vector.load %arg2[%c0, %c0_0] : memref<8x256xbf16, #tpu.memory_space<vmem>>, vector<8x256xbf16>
    %c0_1 = arith.constant 0 : index
    %c0_2 = arith.constant 0 : index
    %1 = vector.load %arg1[%c0_1, %c0_2] : memref<256x256xbf16, #tpu.memory_space<vmem>>, vector<256x256xbf16>
    %cst = arith.constant dense<0.000000e+00> : vector<8x256xf32>
    %2 = tpu.matmul %0, %1, %cst {dimension_numbers = #tpu.dot_dimension_numbers<[1], [0], [0], [1], [0, 0, 1, 1], [], []>} : vector<8x256xbf16>, vector<256x256xbf16>, vector<8x256xf32> -> vector<8x256xf32>
    %c0_3 = arith.constant 0 : index
    %c0_4 = arith.constant 0 : index
    %3 = vector.load %arg3[%c0_3, %c0_4] : memref<8x1xf32, #tpu.memory_space<vmem>>, vector<8x1xf32>
    %4 = vector.broadcast %3 : vector<8x1xf32> to vector<8x256xf32>
    %5 = arith.mulf %2, %4 : vector<8x256xf32>
    %c0_5 = arith.constant 0 : index
    %c0_6 = arith.constant 0 : index
    %6 = vector.load %arg4[%c0_5, %c0_6] : memref<8x1xf32, #tpu.memory_space<vmem>>, vector<8x1xf32>
    %7 = vector.broadcast %6 : vector<8x1xf32> to vector<8x256xf32>
    %8 = arith.addf %5, %7 : vector<8x256xf32>
    %cst_7 = arith.constant 0.000000e+00 : f32
    %9 = vector.broadcast %cst_7 : f32 to vector<8x256xf32>
    %10 = arith.maximumf %8, %9 : vector<8x256xf32>
    %11 = arith.truncf %10 : vector<8x256xf32> to vector<8x256xbf16>
    %c0_8 = arith.constant 0 : index
    %c0_9 = arith.constant 0 : index
    %12 = vector.load %arg5[%c0_8, %c0_9] : memref<8x256xbf16, #tpu.memory_space<vmem>>, vector<8x256xbf16>
    tpu.vector_store %arg5[%c0_8, %c0_9], %11 {strides = array<i32>} : memref<8x256xbf16, #tpu.memory_space<vmem>>, vector<8x256xbf16>,
    return
  }
  func.func @transform_0(%arg0: i32) -> (i32, i32) {
    %c0_i32 = arith.constant 0 : i32
    %c0_i32_0 = arith.constant 0 : i32
    return %c0_i32, %arg0 : i32, i32
  }
  func.func @transform_1(%arg0: i32) -> (i32, i32) {
    %c0_i32 = arith.constant 0 : i32
    %c0_i32_0 = arith.constant 0 : i32
    %c0_i32_1 = arith.constant 0 : i32
    return %c0_i32, %c0_i32_0 : i32, i32
  }
  func.func @transform_2(%arg0: i32) -> (i32, i32) {
    %c0_i32 = arith.constant 0 : i32
    %c0_i32_0 = arith.constant 0 : i32
    %c0_i32_1 = arith.constant 0 : i32
    return %c0_i32, %c0_i32_0 : i32, i32
  }
  func.func @transform_3(%arg0: i32) -> (i32, i32) {
    %c0_i32 = arith.constant 0 : i32
    %c0_i32_0 = arith.constant 0 : i32
    %c0_i32_1 = arith.constant 0 : i32
    return %c0_i32, %c0_i32_0 : i32, i32
  }
  func.func @transform_4(%arg0: i32) -> (i32, i32) {
    %c0_i32 = arith.constant 0 : i32
    %c0_i32_0 = arith.constant 0 : i32
    return %c0_i32, %arg0 : i32, i32
  }
}

module attributes {stable_mosaic.version = 11 : i64} {
  func.func @_matmul_bn_relu_kernel(%arg0: i32, %arg1: memref<128x256xbf16, #tpu.memory_space<vmem>>, %arg2: memref<8x128xbf16, #tpu.memory_space<vmem>>, %arg3: memref<8x1xf32, #tpu.memory_space<vmem>>, %arg4: memref<8x1xf32, #tpu.memory_space<vmem>>, %arg5: memref<8x256xbf16, #tpu.memory_space<vmem>>) attributes {dimension_semantics = [#tpu.dimension_semantics<parallel>], iteration_bounds = array<i64: 2>, scalar_prefetch = 0 : i64, scratch_operands = 0 : i64, tpu.core_type = #tpu.core_type<tc>, window_params = [{transform_indices = @transform_0, window_bounds = array<i64: 128, 256>}, {pipeline_mode = #tpu.pipeline_mode<synchronous>, transform_indices = @transform_1, window_bounds = array<i64: 8, 128>}, {pipeline_mode = #tpu.pipeline_mode<synchronous>, transform_indices = @transform_2, window_bounds = array<i64: 8, 1>}, {pipeline_mode = #tpu.pipeline_mode<synchronous>, transform_indices = @transform_3, window_bounds = array<i64: 8, 1>}, {transform_indices = @transform_4, window_bounds = array<i64: 8, 256>}]} {
    %c0 = arith.constant 0 : index
    %c0_0 = arith.constant 0 : index
    %0 = vector.load %arg2[%c0, %c0_0] : memref<8x128xbf16, #tpu.memory_space<vmem>>, vector<8x128xbf16>
    %c0_1 = arith.constant 0 : index
    %c0_2 = arith.constant 0 : index
    %1 = vector.load %arg1[%c0_1, %c0_2] : memref<128x256xbf16, #tpu.memory_space<vmem>>, vector<128x256xbf16>
    %cst = arith.constant dense<0.000000e+00> : vector<8x256xf32>
    %2 = tpu.matmul %0, %1, %cst {dimension_numbers = #tpu.dot_dimension_numbers<[1], [0], [0], [1], [0, 0, 1, 1], [], []>} : vector<8x128xbf16>, vector<128x256xbf16>, vector<8x256xf32> -> vector<8x256xf32>
    %c0_3 = arith.constant 0 : index
    %c0_4 = arith.constant 0 : index
    %3 = vector.load %arg3[%c0_3, %c0_4] : memref<8x1xf32, #tpu.memory_space<vmem>>, vector<8x1xf32>
    %4 = vector.broadcast %3 : vector<8x1xf32> to vector<8x256xf32>
    %5 = arith.mulf %2, %4 : vector<8x256xf32>
    %c0_5 = arith.constant 0 : index
    %c0_6 = arith.constant 0 : index
    %6 = vector.load %arg4[%c0_5, %c0_6] : memref<8x1xf32, #tpu.memory_space<vmem>>, vector<8x1xf32>
    %7 = vector.broadcast %6 : vector<8x1xf32> to vector<8x256xf32>
    %8 = arith.addf %5, %7 : vector<8x256xf32>
    %cst_7 = arith.constant 0.000000e+00 : f32
    %9 = vector.broadcast %cst_7 : f32 to vector<8x256xf32>
    %10 = arith.maximumf %8, %9 : vector<8x256xf32>
    %11 = arith.truncf %10 : vector<8x256xf32> to vector<8x256xbf16>
    %c0_8 = arith.constant 0 : index
    %c0_9 = arith.constant 0 : index
    %12 = vector.load %arg5[%c0_8, %c0_9] : memref<8x256xbf16, #tpu.memory_space<vmem>>, vector<8x256xbf16>
    tpu.vector_store %arg5[%c0_8, %c0_9], %11 {strides = array<i32>} : memref<8x256xbf16, #tpu.memory_space<vmem>>, vector<8x256xbf16>,
    return
  }
  func.func @transform_0(%arg0: i32) -> (i32, i32) {
    %c0_i32 = arith.constant 0 : i32
    %c0_i32_0 = arith.constant 0 : i32
    return %c0_i32, %arg0 : i32, i32
  }
  func.func @transform_1(%arg0: i32) -> (i32, i32) {
    %c0_i32 = arith.constant 0 : i32
    %c0_i32_0 = arith.constant 0 : i32
    %c0_i32_1 = arith.constant 0 : i32
    return %c0_i32, %c0_i32_0 : i32, i32
  }
  func.func @transform_2(%arg0: i32) -> (i32, i32) {
    %c0_i32 = arith.constant 0 : i32
    %c0_i32_0 = arith.constant 0 : i32
    %c0_i32_1 = arith.constant 0 : i32
    return %c0_i32, %c0_i32_0 : i32, i32
  }
  func.func @transform_3(%arg0: i32) -> (i32, i32) {
    %c0_i32 = arith.constant 0 : i32
    %c0_i32_0 = arith.constant 0 : i32
    %c0_i32_1 = arith.constant 0 : i32
    return %c0_i32, %c0_i32_0 : i32, i32
  }
  func.func @transform_4(%arg0: i32) -> (i32, i32) {
    %c0_i32 = arith.constant 0 : i32
    %c0_i32_0 = arith.constant 0 : i32
    return %c0_i32, %arg0 : i32, i32
  }
}

module attributes {stable_mosaic.version = 11 : i64} {
  func.func @_matmul_bn_relu_kernel(%arg0: i32, %arg1: memref<128x128xbf16, #tpu.memory_space<vmem>>, %arg2: memref<8x128xbf16, #tpu.memory_space<vmem>>, %arg3: memref<8x1xf32, #tpu.memory_space<vmem>>, %arg4: memref<8x1xf32, #tpu.memory_space<vmem>>, %arg5: memref<8x128xf32, #tpu.memory_space<vmem>>) attributes {dimension_semantics = [#tpu.dimension_semantics<parallel>], iteration_bounds = array<i64: 1>, scalar_prefetch = 0 : i64, scratch_operands = 0 : i64, tpu.core_type = #tpu.core_type<tc>, window_params = [{transform_indices = @transform_0, window_bounds = array<i64: 128, 128>}, {pipeline_mode = #tpu.pipeline_mode<synchronous>, transform_indices = @transform_1, window_bounds = array<i64: 8, 128>}, {pipeline_mode = #tpu.pipeline_mode<synchronous>, transform_indices = @transform_2, window_bounds = array<i64: 8, 1>}, {pipeline_mode = #tpu.pipeline_mode<synchronous>, transform_indices = @transform_3, window_bounds = array<i64: 8, 1>}, {transform_indices = @transform_4, window_bounds = array<i64: 8, 128>}]} {
    %c0 = arith.constant 0 : index
    %c0_0 = arith.constant 0 : index
    %0 = vector.load %arg2[%c0, %c0_0] : memref<8x128xbf16, #tpu.memory_space<vmem>>, vector<8x128xbf16>
    %c0_1 = arith.constant 0 : index
    %c0_2 = arith.constant 0 : index
    %1 = vector.load %arg1[%c0_1, %c0_2] : memref<128x128xbf16, #tpu.memory_space<vmem>>, vector<128x128xbf16>
    %cst = arith.constant dense<0.000000e+00> : vector<8x128xf32>
    %2 = tpu.matmul %0, %1, %cst {dimension_numbers = #tpu.dot_dimension_numbers<[1], [0], [0], [1], [0, 0, 1, 1], [], []>} : vector<8x128xbf16>, vector<128x128xbf16>, vector<8x128xf32> -> vector<8x128xf32>
    %c0_3 = arith.constant 0 : index
    %c0_4 = arith.constant 0 : index
    %3 = vector.load %arg3[%c0_3, %c0_4] : memref<8x1xf32, #tpu.memory_space<vmem>>, vector<8x1xf32>
    %4 = vector.broadcast %3 : vector<8x1xf32> to vector<8x128xf32>
    %5 = arith.mulf %2, %4 : vector<8x128xf32>
    %c0_5 = arith.constant 0 : index
    %c0_6 = arith.constant 0 : index
    %6 = vector.load %arg4[%c0_5, %c0_6] : memref<8x1xf32, #tpu.memory_space<vmem>>, vector<8x1xf32>
    %7 = vector.broadcast %6 : vector<8x1xf32> to vector<8x128xf32>
    %8 = arith.addf %5, %7 : vector<8x128xf32>
    %cst_7 = arith.constant 0.000000e+00 : f32
    %9 = vector.broadcast %cst_7 : f32 to vector<8x128xf32>
    %10 = arith.maximumf %8, %9 : vector<8x128xf32>
    %c0_8 = arith.constant 0 : index
    %c0_9 = arith.constant 0 : index
    %11 = vector.load %arg5[%c0_8, %c0_9] : memref<8x128xf32, #tpu.memory_space<vmem>>, vector<8x128xf32>
    tpu.vector_store %arg5[%c0_8, %c0_9], %10 {strides = array<i32>} : memref<8x128xf32, #tpu.memory_space<vmem>>, vector<8x128xf32>,
    return
  }
  func.func @transform_0(%arg0: i32) -> (i32, i32) {
    %c0_i32 = arith.constant 0 : i32
    %c0_i32_0 = arith.constant 0 : i32
    return %c0_i32, %arg0 : i32, i32
  }
  func.func @transform_1(%arg0: i32) -> (i32, i32) {
    %c0_i32 = arith.constant 0 : i32
    %c0_i32_0 = arith.constant 0 : i32
    %c0_i32_1 = arith.constant 0 : i32
    return %c0_i32, %c0_i32_0 : i32, i32
  }
  func.func @transform_2(%arg0: i32) -> (i32, i32) {
    %c0_i32 = arith.constant 0 : i32
    %c0_i32_0 = arith.constant 0 : i32
    %c0_i32_1 = arith.constant 0 : i32
    return %c0_i32, %c0_i32_0 : i32, i32
  }
  func.func @transform_3(%arg0: i32) -> (i32, i32) {
    %c0_i32 = arith.constant 0 : i32
    %c0_i32_0 = arith.constant 0 : i32
    %c0_i32_1 = arith.constant 0 : i32
    return %c0_i32, %c0_i32_0 : i32, i32
  }
  func.func @transform_4(%arg0: i32) -> (i32, i32) {
    %c0_i32 = arith.constant 0 : i32
    %c0_i32_0 = arith.constant 0 : i32
    return %c0_i32, %arg0 : i32, i32
  }
}

</mosaic_0001>

<llo_original>
// kernel: dla_init_block.3
$region0: #{dla_init_block.3}
  #allocation0 [shape = 'u32[]', space=smem, size = 0x4, offset = 0x4, fixed_abs, tag = 'smem constant byte address 0x4 - core index']
  #allocation1 [shape = 'u32[72,128]{1,0:T(1,128)}', space=vmem, size = 0x9000, scoped, tag = 'internal scratch']
  %s0 = inlined_call_operand.vmem [shape: bf16[256,512], index: 0, kind: input, shape index: {}]
  %s1 = inlined_call_operand.vmem [shape: bf16[8,256], index: 1, kind: input, shape index: {}]
  %s2 = inlined_call_operand.vmem [shape: f32[8,1], index: 2, kind: input, shape index: {}]
  %s3 = inlined_call_operand.vmem [shape: f32[8,1], index: 3, kind: input, shape index: {}]
  %s4 = inlined_call_operand.vmem [shape: bf16[8,512], index: 4, kind: output, shape index: {}]
  %s5 = sld [smem:[#allocation0]]
  $region87: #{dla_init_block.3} parent=0
    _
  %s7 = ssub.s32 1, %s5
  %s8 = scalar_select 0, %s7, %s5
  $region1: #{dla_init_block.3} parent=0
    #allocation2 [shape = 'u8[262144]{0}', space=vmem, size = 0x40000, scoped, tag = 'input window, operand 0']
    loop: start=0, step=1, limit=4
    $region2: #{dla_init_block.3} parent=1 // loop_pre_header
      _
    $region3: #{dla_init_block.3} parent=1 // loop_header
      %s10 = sphi 0, %s14
      %p11 = scmp.ge.s32.totalorder %s10, 4
      %s20 = sphi 0, %s22
      %s23 = sphi 0, %s20
      %s24 = sphi 0, %s23
      %s40 = sphi 0, %s24
      %s44 = sphi 0, %s44
      %s46 = sphi 0, %s44
      %s47 = sphi 0, %s46
      %s61 = sphi 0, %s47
      %s65 = sphi 0, %s65
      %s67 = sphi 0, %s65
      %s68 = sphi 0, %s67
      %s82 = sphi 0, %s68
      %s86 = sphi 0, %s86
      %s88 = sphi 0, %s86
      %s89 = sphi 0, %s88
      %s103 = sphi 0, %s89
      %s109 = sphi 0, %s111
      %s112 = sphi 0, %s109
      %s113 = sphi 0, %s112
      %s129 = sphi 0, %s113
    $region4: #{dla_init_block.3} parent=1 // loop_header_branch
      %13 = sbr.rel (%p11) target = $region8
    $region5: #{dla_init_block.3} parent=1 // loop_body
      %s15 = ssub.s32 %s10, 1
      %s16 = ssub.s32 %s10, 2
      %s17 = sadd.s32 %s10, 1
      %s18 = ssub.s32 %s10, %s17
      %p19 = scmp.eq.s32.totalorder %s18, 0
      %s21 = sadd.s32 %s20, 1
      %s22 = scalar_select %p19, %s20, %s21
      %p25 = pneg %p19
      %p26 = scmp.eq.s32.totalorder %s10, 1
      %p27 = por %p25, %p26
      %p28 = scmp.ne.s32.totalorder %s20, %s23
      %p29 = scmp.eq.s32.totalorder %s10, 0
      %p30 = por %p28, %p29
      %p31 = scmp.ne.s32.totalorder %s20, %s23
      %p32 = scmp.eq.s32.totalorder %s15, 1
      %p33 = por %p31, %p32
      %p34 = scmp.ne.s32.totalorder %s23, %s24
      %p35 = scmp.eq.s32.totalorder %s15, 0
      %p36 = por %p34, %p35
      %p37 = scmp.ne.s32.totalorder %s23, %s24
      %p38 = scmp.eq.s32.totalorder %s16, 1
      %p39 = por %p37, %p38
      %p41 = scmp.ne.s32.totalorder %s24, %s40
      %p42 = scmp.eq.s32.totalorder %s16, 0
      %p43 = por %p41, %p42
      %s45 = sadd.s32 %s44, 1
      %p48 = scmp.eq.s32.totalorder %s10, 1
      %p49 = scmp.ne.s32.totalorder %s44, %s46
      %p50 = scmp.eq.s32.totalorder %s10, 0
      %p51 = por %p49, %p50
      %p52 = scmp.ne.s32.totalorder %s44, %s46
      %p53 = scmp.eq.s32.totalorder %s15, 1
      %p54 = por %p52, %p53
      %p55 = scmp.ne.s32.totalorder %s46, %s47
      %p56 = scmp.eq.s32.totalorder %s15, 0
      %p57 = por %p55, %p56
      %p58 = scmp.ne.s32.totalorder %s46, %s47
      %p59 = scmp.eq.s32.totalorder %s16, 1
      %p60 = por %p58, %p59
      %p62 = scmp.ne.s32.totalorder %s47, %s61
      %p63 = scmp.eq.s32.totalorder %s16, 0
      %p64 = por %p62, %p63
      %s66 = sadd.s32 %s65, 1
      %p69 = scmp.eq.s32.totalorder %s10, 1
      %p70 = scmp.ne.s32.totalorder %s65, %s67
      %p71 = scmp.eq.s32.totalorder %s10, 0
      %p72 = por %p70, %p71
      %p73 = scmp.ne.s32.totalorder %s65, %s67
      %p74 = scmp.eq.s32.totalorder %s15, 1
      %p75 = por %p73, %p74
      %p76 = scmp.ne.s32.totalorder %s67, %s68
      %p77 = scmp.eq.s32.totalorder %s15, 0
      %p78 = por %p76, %p77
      %p79 = scmp.ne.s32.totalorder %s67, %s68
      %p80 = scmp.eq.s32.totalorder %s16, 1
      %p81 = por %p79, %p80
      %p83 = scmp.ne.s32.totalorder %s68, %s82
      %p84 = scmp.eq.s32.totalorder %s16, 0
      %p85 = por %p83, %p84
      %s87 = sadd.s32 %s86, 1
      %p90 = scmp.eq.s32.totalorder %s10, 1
      %p91 = scmp.ne.s32.totalorder %s86, %s88
      %p92 = scmp.eq.s32.totalorder %s10, 0
      %p93 = por %p91, %p92
      %p94 = scmp.ne.s32.totalorder %s86, %s88
      %p95 = scmp.eq.s32.totalorder %s15, 1
      %p96 = por %p94, %p95
      %p97 = scmp.ne.s32.totalorder %s88, %s89
      %p98 = scmp.eq.s32.totalorder %s15, 0
      %p99 = por %p97, %p98
      %p100 = scmp.ne.s32.totalorder %s88, %s89
      %p101 = scmp.eq.s32.totalorder %s16, 1
      %p102 = por %p100, %p101
      %p104 = scmp.ne.s32.totalorder %s89, %s103
      %p105 = scmp.eq.s32.totalorder %s16, 0
      %p106 = por %p104, %p105
      %s107 = ssub.s32 %s10, %s17
      %p108 = scmp.eq.s32.totalorder %s107, 0
      %s110 = sadd.s32 %s109, 1
      %s111 = scalar_select %p108, %s109, %s110
      %p114 = pneg %p108
      %p115 = scmp.eq.s32.totalorder %s10, 1
      %p116 = por %p114, %p115
      %p117 = scmp.ne.s32.totalorder %s109, %s112
      %p118 = scmp.eq.s32.totalorder %s10, 0
      %p119 = por %p117, %p118
      %p120 = scmp.ne.s32.totalorder %s109, %s112
      %p121 = scmp.eq.s32.totalorder %s15, 1
      %p122 = por %p120, %p121
      %p123 = scmp.ne.s32.totalorder %s112, %s113
      %p124 = scmp.eq.s32.totalorder %s15, 0
      %p125 = por %p123, %p124
      %p126 = scmp.ne.s32.totalorder %s112, %s113
      %p127 = scmp.eq.s32.totalorder %s16, 1
      %p128 = por %p126, %p127
      %p130 = scmp.ne.s32.totalorder %s113, %s129
      %p131 = scmp.eq.s32.totalorder %s16, 0
      %p132 = por %p130, %p131
      %p133 = scmp.le.s32.totalorder 1, %s10
      %p134 = scmp.lt.s32.totalorder %s10, 3
      %p135 = pnand %p133, %p134
      %p136 = pneg %p135
      // Predicated region
      $region9: #{dla_init_block.3} parent=5 // pred_check
        _
      $region10: #{dla_init_block.3} parent=5 // pred_check_branch
        %138 = sbr.rel (%p135) target = $region12
      $region11: #{dla_init_block.3} parent=5 // pred_region
        %s139 = ssub.s32 %s10, 1
        // Predicated region
        $region13: #{dla_init_block.3} parent=11 // pred_check
          %p140 = pneg %p57
        $region14: #{dla_init_block.3} parent=11 // pred_check_branch
          %142 = sbr.rel (%p140) target = $region16
        $region15: #{dla_init_block.3} parent=11 // pred_region
          _
        $region16: #{dla_init_block.3} parent=11 // pred_fallthru
          _
        // Predicated region
        $region17: #{dla_init_block.3} parent=11 // pred_check
          %p143 = pneg %p78
        $region18: #{dla_init_block.3} parent=11 // pred_check_branch
          %145 = sbr.rel (%p143) target = $region20
        $region19: #{dla_init_block.3} parent=11 // pred_region
          _
        $region20: #{dla_init_block.3} parent=11 // pred_fallthru
          _
        // Predicated region
        $region21: #{dla_init_block.3} parent=11 // pred_check
          %p146 = pneg %p99
        $region22: #{dla_init_block.3} parent=11 // pred_check_branch
          %148 = sbr.rel (%p146) target = $region24
        $region23: #{dla_init_block.3} parent=11 // pred_region
          _
        $region24: #{dla_init_block.3} parent=11 // pred_fallthru
          _
      $region12: #{dla_init_block.3} parent=5 // pred_fallthru
        _
      %p149 = scmp.lt.s32.totalorder %s10, 2
      // Predicated region
      $region25: #{dla_init_block.3} parent=5 // pred_check
        %p150 = pneg %p149
      $region26: #{dla_init_block.3} parent=5 // pred_check_branch
        %152 = sbr.rel (%p150) target = $region28
      $region27: #{dla_init_block.3} parent=5 // pred_region
        // Predicated region
        $region29: #{dla_init_block.3} parent=27 // pred_check
          %p153 = pneg %p30
        $region30: #{dla_init_block.3} parent=27 // pred_check_branch
          %155 = sbr.rel (%p153) target = $region32
        $region31: #{dla_init_block.3} parent=27 // pred_region
          %s156 = sand.u32 %s20, 1
          %s157 = sand.u32 %s20, 1
          %s158 = smul.addr %s157, 256
          %s159 = scalar_lea.vmem [#allocation2], %s158
          %s160 = smul.u32 2, %s10
          %s161 = smul.addr %s160, 4
          %s162 = scalar_lea.vmem %s0, %s161
          // Predicated region
          $region33: #{dla_init_block.3} parent=31 // pred_check
            _
          $region34: #{dla_init_block.3} parent=31 // pred_check_branch
            %164 = sbr.rel (0) target = $region36
          $region35: #{dla_init_block.3} parent=31 // pred_region
            // Predicated region
            $region37: #{dla_init_block.3} parent=35 // pred_check
              _
            $region38: #{dla_init_block.3} parent=35 // pred_check_branch
              %166 = sbr.rel (0) target = $region40
            $region39: #{dla_init_block.3} parent=35 // pred_region
              // Predicated region
              $region52: #{dla_init_block.3} parent=39 // pred_check
                _
              $region53: #{dla_init_block.3} parent=39 // pred_check_branch
                %244 = sbr.rel (0) target = $region55
              $region54: #{dla_init_block.3} parent=39 // pred_region
                loop: start=0, step=1, limit=1
                $region56: #{dla_init_block.3} parent=54 // loop_pre_header
                  _
                $region57: #{dla_init_block.3} parent=54 // loop_header
                  %s246 = sphi 0, %s250
                  %p247 = scmp.ge.s32.totalorder %s246, 1
                  %s251 = sphi %s162, %s162
                  %s252 = sphi %s159, %s159
                $region58: #{dla_init_block.3} parent=54 // loop_header_branch
                  %249 = sbr.rel (%p247) target = $region62
                $region59: #{dla_init_block.3} parent=54 // loop_body
                  %v253 = vld [vmem:[%s251] sm:$0xff]
                  %254 = vst [vmem:[%s252] sm:$0xff] %v253
                  %v255 = vld [vmem:[%s251 + $0x10] sm:$0xff]
                  %256 = vst [vmem:[%s252 + $0x8] sm:$0xff] %v255
                  %v257 = vld [vmem:[%s251 + $0x20] sm:$0xff]
                  %258 = vst [vmem:[%s252 + $0x10] sm:$0xff] %v257
                  %v259 = vld [vmem:[%s251 + $0x30] sm:$0xff]
                  %260 = vst [vmem:[%s252 + $0x18] sm:$0xff] %v259
                  %v261 = vld [vmem:[%s251 + $0x40] sm:$0xff]
                  %262 = vst [vmem:[%s252 + $0x20] sm:$0xff] %v261
                  %v263 = vld [vmem:[%s251 + $0x50] sm:$0xff]
                  %264 = vst [vmem:[%s252 + $0x28] sm:$0xff] %v263
                  %v265 = vld [vmem:[%s251 + $0x60] sm:$0xff]
                  %266 = vst [vmem:[%s252 + $0x30] sm:$0xff] %v265
                  %v267 = vld [vmem:[%s251 + $0x70] sm:$0xff]
                  %268 = vst [vmem:[%s252 + $0x38] sm:$0xff] %v267
                  %v269 = vld [vmem:[%s251 + $0x80] sm:$0xff]
                  %270 = vst [vmem:[%s252 + $0x40] sm:$0xff] %v269
                  %v271 = vld [vmem:[%s251 + $0x90] sm:$0xff]
                  %272 = vst [vmem:[%s252 + $0x48] sm:$0xff] %v271
                  %v273 = vld [vmem:[%s251 + $0xa0] sm:$0xff]
                  %274 = vst [vmem:[%s252 + $0x50] sm:$0xff] %v273
                  %v275 = vld [vmem:[%s251 + $0xb0] sm:$0xff]
                  %276 = vst [vmem:[%s252 + $0x58] sm:$0xff] %v275
                  %v277 = vld [vmem:[%s251 + $0xc0] sm:$0xff]
                  %278 = vst [vmem:[%s252 + $0x60] sm:$0xff] %v277
                  %v279 = vld [vmem:[%s251 + $0xd0] sm:$0xff]
                  %280 = vst [vmem:[%s252 + $0x68] sm:$0xff] %v279
                  %v281 = vld [vmem:[%s251 + $0xe0] sm:$0xff]
                  %282 = vst [vmem:[%s252 + $0x70] sm:$0xff] %v281
                  %v283 = vld [vmem:[%s251 + $0xf0] sm:$0xff]
                  %284 = vst [vmem:[%s252 + $0x78] sm:$0xff] %v283
                  %v285 = vld [vmem:[%s251 + $0x100] sm:$0xff]
                  %286 = vst [vmem:[%s252 + $0x80] sm:$0xff] %v285
                  %v287 = vld [vmem:[%s251 + $0x110] sm:$0xff]
                  %288 = vst [vmem:[%s252 + $0x88] sm:$0xff] %v287
                  %v289 = vld [vmem:[%s251 + $0x120] sm:$0xff]
                  %290 = vst [vmem:[%s252 + $0x90] sm:$0xff] %v289
                  %v291 = vld [vmem:[%s251 + $0x130] sm:$0xff]
                  %292 = vst [vmem:[%s252 + $0x98] sm:$0xff] %v291
                  %v293 = vld [vmem:[%s251 + $0x140] sm:$0xff]
                  %294 = vst [vmem:[%s252 + $0xa0] sm:$0xff] %v293
                  %v295 = vld [vmem:[%s251 + $0x150] sm:$0xff]
                  %296 = vst [vmem:[%s252 + $0xa8] sm:$0xff] %v295
                  %v297 = vld [vmem:[%s251 + $0x160] sm:$0xff]
                  %298 = vst [vmem:[%s252 + $0xb0] sm:$0xff] %v297
                  %v299 = vld [vmem:[%s251 + $0x170] sm:$0xff]
                  %300 = vst [vmem:[%s252 + $0xb8] sm:$0xff] %v299
                  %v301 = vld [vmem:[%s251 + $0x180] sm:$0xff]
                  %302 = vst [vmem:[%s252 + $0xc0] sm:$0xff] %v301
                  %v303 = vld [vmem:[%s251 + $0x190] sm:$0xff]
                  %304 = vst [vmem:[%s252 + $0xc8] sm:$0xff] %v303
                  %v305 = vld [vmem:[%s251 + $0x1a0] sm:$0xff]
                  %306 = vst [vmem:[%s252 + $0xd0] sm:$0xff] %v305
                  %v307 = vld [vmem:[%s251 + $0x1b0] sm:$0xff]
                  %308 = vst [vmem:[%s252 + $0xd8] sm:$0xff] %v307
                  %v309 = vld [vmem:[%s251 + $0x1c0] sm:$0xff]
                  %310 = vst [vmem:[%s252 + $0xe0] sm:$0xff] %v309
                  %v311 = vld [vmem:[%s251 + $0x1d0] sm:$0xff]
                  %312 = vst [vmem:[%s252 + $0xe8] sm:$0xff] %v311
                  %v313 = vld [vmem:[%s251 + $0x1e0] sm:$0xff]
                  %314 = vst [vmem:[%s252 + $0xf0] sm:$0xff] %v313
                  %v315 = vld [vmem:[%s251 + $0x1f0] sm:$0xff]
                  %316 = vst [vmem:[%s252 + $0xf8] sm:$0xff] %v315
                $region60: #{dla_init_block.3} parent=54 // loop_footer
                  %s250 = sadd.s32 1, %s246
                $region61: #{dla_init_block.3} parent=54 // loop_footer_branch
                  %245 = sbr.rel target = $region57
                $region62: #{dla_init_block.3} parent=54 // loop_exit
                  _
              $region55: #{dla_init_block.3} parent=39 // pred_fallthru
                _
              // Predicated region
              $region63: #{dla_init_block.3} parent=39 // pred_check
                _
              $region64: #{dla_init_block.3} parent=39 // pred_check_branch
                %318 = sbr.rel target = $region66
              $region65: #{dla_init_block.3} parent=39 // pred_region
                _
              $region66: #{dla_init_block.3} parent=39 // pred_fallthru
                _
            $region40: #{dla_init_block.3} parent=35 // pred_fallthru
              _
            // Predicated region
            $region41: #{dla_init_block.3} parent=35 // pred_check
              _
            $region42: #{dla_init_block.3} parent=35 // pred_check_branch
              %168 = sbr.rel target = $region44
            $region43: #{dla_init_block.3} parent=35 // pred_region
              %s170 = ssub.s32 256, 1
              loop: start=0, step=1, limit=1
              $region45: #{dla_init_block.3} parent=43 // loop_pre_header
                _
              $region46: #{dla_init_block.3} parent=43 // loop_header
                %s172 = sphi 0, %s176
                %p173 = scmp.ge.s32.totalorder %s172, 1
                %s177 = sphi %s162, %s162
                %s178 = sphi %s159, %s159
              $region47: #{dla_init_block.3} parent=43 // loop_header_branch
                %175 = sbr.rel (%p173) target = $region51
              $region48: #{dla_init_block.3} parent=43 // loop_body
                %v179 = vld [vmem:[%s177] sm:%s170]
                %180 = vst [vmem:[%s178] sm:%s170] %v179
                %v181 = vld [vmem:[%s177 + $0x10] sm:%s170]
                %182 = vst [vmem:[%s178 + $0x8] sm:%s170] %v181
                %v183 = vld [vmem:[%s177 + $0x20] sm:%s170]
                %184 = vst [vmem:[%s178 + $0x10] sm:%s170] %v183
                %v185 = vld [vmem:[%s177 + $0x30] sm:%s170]
                %186 = vst [vmem:[%s178 + $0x18] sm:%s170] %v185
                %v187 = vld [vmem:[%s177 + $0x40] sm:%s170]
                %188 = vst [vmem:[%s178 + $0x20] sm:%s170] %v187
                %v189 = vld [vmem:[%s177 + $0x50] sm:%s170]
                %190 = vst [vmem:[%s178 + $0x28] sm:%s170] %v189
                %v191 = vld [vmem:[%s177 + $0x60] sm:%s170]
                %192 = vst [vmem:[%s178 + $0x30] sm:%s170] %v191
                %v193 = vld [vmem:[%s177 + $0x70] sm:%s170]
                %194 = vst [vmem:[%s178 + $0x38] sm:%s170] %v193
                %v195 = vld [vmem:[%s177 + $0x80] sm:%s170]
                %196 = vst [vmem:[%s178 + $0x40] sm:%s170] %v195
                %v197 = vld [vmem:[%s177 + $0x90] sm:%s170]
                %198 = vst [vmem:[%s178 + $0x48] sm:%s170] %v197
                %v199 = vld [vmem:[%s177 + $0xa0] sm:%s170]
                %200 = vst [vmem:[%s178 + $0x50] sm:%s170] %v199
                %v201 = vld [vmem:[%s177 + $0xb0] sm:%s170]
                %202 = vst [vmem:[%s178 + $0x58] sm:%s170] %v201
                %v203 = vld [vmem:[%s177 + $0xc0] sm:%s170]
                %204 = vst [vmem:[%s178 + $0x60] sm:%s170] %v203
                %v205 = vld [vmem:[%s177 + $0xd0] sm:%s170]
                %206 = vst [vmem:[%s178 + $0x68] sm:%s170] %v205
                %v207 = vld [vmem:[%s177 + $0xe0] sm:%s170]
                %208 = vst [vmem:[%s178 + $0x70] sm:%s170] %v207
                %v209 = vld [vmem:[%s177 + $0xf0] sm:%s170]
                %210 = vst [vmem:[%s178 + $0x78] sm:%s170] %v209
                %v211 = vld [vmem:[%s177 + $0x100] sm:%s170]
                %212 = vst [vmem:[%s178 + $0x80] sm:%s170] %v211
                %v213 = vld [vmem:[%s177 + $0x110] sm:%s170]
                %214 = vst [vmem:[%s178 + $0x88] sm:%s170] %v213
                %v215 = vld [vmem:[%s177 + $0x120] sm:%s170]
                %216 = vst [vmem:[%s178 + $0x90] sm:%s170] %v215
                %v217 = vld [vmem:[%s177 + $0x130] sm:%s170]
                %218 = vst [vmem:[%s178 + $0x98] sm:%s170] %v217
                %v219 = vld [vmem:[%s177 + $0x140] sm:%s170]
                %220 = vst [vmem:[%s178 + $0xa0] sm:%s170] %v219
                %v221 = vld [vmem:[%s177 + $0x150] sm:%s170]
                %222 = vst [vmem:[%s178 + $0xa8] sm:%s170] %v221
                %v223 = vld [vmem:[%s177 + $0x160] sm:%s170]
                %224 = vst [vmem:[%s178 + $0xb0] sm:%s170] %v223
                %v225 = vld [vmem:[%s177 + $0x170] sm:%s170]
                %226 = vst [vmem:[%s178 + $0xb8] sm:%s170] %v225
                %v227 = vld [vmem:[%s177 + $0x180] sm:%s170]
                %228 = vst [vmem:[%s178 + $0xc0] sm:%s170] %v227
                %v229 = vld [vmem:[%s177 + $0x190] sm:%s170]
                %230 = vst [vmem:[%s178 + $0xc8] sm:%s170] %v229
                %v231 = vld [vmem:[%s177 + $0x1a0] sm:%s170]
                %232 = vst [vmem:[%s178 + $0xd0] sm:%s170] %v231
                %v233 = vld [vmem:[%s177 + $0x1b0] sm:%s170]
                %234 = vst [vmem:[%s178 + $0xd8] sm:%s170] %v233
                %v235 = vld [vmem:[%s177 + $0x1c0] sm:%s170]
                %236 = vst [vmem:[%s178 + $0xe0] sm:%s170] %v235
                %v237 = vld [vmem:[%s177 + $0x1d0] sm:%s170]
                %238 = vst [vmem:[%s178 + $0xe8] sm:%s170] %v237
                %v239 = vld [vmem:[%s177 + $0x1e0] sm:%s170]
                %240 = vst [vmem:[%s178 + $0xf0] sm:%s170] %v239
                %v241 = vld [vmem:[%s177 + $0x1f0] sm:%s170]
                %242 = vst [vmem:[%s178 + $0xf8] sm:%s170] %v241
              $region49: #{dla_init_block.3} parent=43 // loop_footer
                %s176 = sadd.s32 1, %s172
              $region50: #{dla_init_block.3} parent=43 // loop_footer_branch
                %171 = sbr.rel target = $region46
              $region51: #{dla_init_block.3} parent=43 // loop_exit
                _
            $region44: #{dla_init_block.3} parent=35 // pred_fallthru
              _
          $region36: #{dla_init_block.3} parent=31 // pred_fallthru
            _
          %319 = vnop
        $region32: #{dla_init_block.3} parent=27 // pred_fallthru
          _
      $region28: #{dla_init_block.3} parent=5 // pred_fallthru
        _
      %p320 = scmp.le.s32.totalorder 1, %s10
      %p321 = scmp.lt.s32.totalorder %s10, 3
      %p322 = pnand %p320, %p321
      %p323 = pneg %p322
      // Predicated region
      $region67: #{dla_init_block.3} parent=5 // pred_check
        _
      $region68: #{dla_init_block.3} parent=5 // pred_check_branch
        %325 = sbr.rel (%p322) target = $region70
      $region69: #{dla_init_block.3} parent=5 // pred_region
        %s326 = ssub.s32 %s10, 1
        %s327 = sand.u32 %s23, 1
        %s328 = sand.u32 %s23, 1
        %s329 = smul.addr %s328, 256
        %s330 = scalar_lea.vmem [#allocation2], %s329
        // Predicated region
        $region71: #{dla_init_block.3} parent=69 // pred_check
          %p331 = pneg %p36
        $region72: #{dla_init_block.3} parent=69 // pred_check_branch
          %333 = sbr.rel (%p331) target = $region74
        $region73: #{dla_init_block.3} parent=69 // pred_region
          _
        $region74: #{dla_init_block.3} parent=69 // pred_fallthru
          _
        %s334 = sand.u32 %s23, 1
        %s335 = sand.u32 %s23, 1
        %s336 = smul.addr %s335, 256
        %s337 = scalar_lea.vmem [#allocation2], %s336
        %p338 = pneg %p36
        %p339 = pneg %p33
        %p340 = pneg %p57
        %p341 = pneg %p54
        %p342 = pneg %p78
        %p343 = pneg %p75
        %p344 = pneg %p99
        %p345 = pneg %p96
        %p346 = pneg %p125
        %p347 = pneg %p122
        %s348 = smul.u32 2, %s15
        %p349 = scmp.lt.s32.totalorder %s348, 3
        %s350 = scalar_select %p349, %s348, 3
        %s351 = smul.addr %s350, 4
        %s352 = scalar_lea.vmem %s4, %s351
        %s353 = smul.u32 2, %s15
        %s354 = smul.u32 2, %s15
        %p355 = scmp.lt.s32.totalorder %s354, 3
        %s356 = scalar_select %p355, %s354, 3
        %s357 = smul.addr %s356, 4
        %s358 = scalar_lea.vmem %s4, %s357
        %s359 = smul.u32 2, %s15
        %v360 = vld [vmem:[%s1] sm:$0xff]
        %v361 = vld [vmem:[%s330] sm:$0xff]
        %v362 = vld [vmem:[%s330 + $0x8] sm:$0xff]
        %v363 = vld [vmem:[%s330 + $0x10] sm:$0xff]
        %v364 = vld [vmem:[%s330 + $0x18] sm:$0xff]
        %v365 = vld [vmem:[%s330 + $0x20] sm:$0xff]
        %v366 = vld [vmem:[%s330 + $0x28] sm:$0xff]
        %v367 = vld [vmem:[%s330 + $0x30] sm:$0xff]
        %v368 = vld [vmem:[%s330 + $0x38] sm:$0xff]
        %v369 = vld [vmem:[%s330 + $0x40] sm:$0xff]
        %v370 = vld [vmem:[%s330 + $0x48] sm:$0xff]
        %v371 = vld [vmem:[%s330 + $0x50] sm:$0xff]
        %v372 = vld [vmem:[%s330 + $0x58] sm:$0xff]
        %v373 = vld [vmem:[%s330 + $0x60] sm:$0xff]
        %v374 = vld [vmem:[%s330 + $0x68] sm:$0xff]
        %v375 = vld [vmem:[%s330 + $0x70] sm:$0xff]
        %v376 = vld [vmem:[%s330 + $0x78] sm:$0xff]
        %v377 = vld [vmem:[%s330 + $0x80] sm:$0xff]
        %v378 = vld [vmem:[%s330 + $0x88] sm:$0xff]
        %v379 = vld [vmem:[%s330 + $0x90] sm:$0xff]
        %v380 = vld [vmem:[%s330 + $0x98] sm:$0xff]
        %v381 = vld [vmem:[%s330 + $0xa0] sm:$0xff]
        %v382 = vld [vmem:[%s330 + $0xa8] sm:$0xff]
        %v383 = vld [vmem:[%s330 + $0xb0] sm:$0xff]
        %v384 = vld [vmem:[%s330 + $0xb8] sm:$0xff]
        %v385 = vld [vmem:[%s330 + $0xc0] sm:$0xff]
        %v386 = vld [vmem:[%s330 + $0xc8] sm:$0xff]
        %v387 = vld [vmem:[%s330 + $0xd0] sm:$0xff]
        %v388 = vld [vmem:[%s330 + $0xd8] sm:$0xff]
        %v389 = vld [vmem:[%s330 + $0xe0] sm:$0xff]
        %v390 = vld [vmem:[%s330 + $0xe8] sm:$0xff]
        %v391 = vld [vmem:[%s330 + $0xf0] sm:$0xff]
        %v392 = vld [vmem:[%s330 + $0xf8] sm:$0xff]
        %v394 = vunpack.c.l.b16 %v360
        %v395 = vunpack.c.h.b16 %v360
        %v396 = vpack.c.b16 %v394, %v394
        %v397 = vpack.c.b16 %v395, %v395
        %v432 = vunpack.c.l.b16 %v361
        %v433 = vunpack.c.h.b16 %v361
        %v434 = vunpack.c.l.b16 %v362
        %v435 = vunpack.c.h.b16 %v362
        %v436 = vunpack.c.l.b16 %v363
        %v437 = vunpack.c.h.b16 %v363
        %v438 = vunpack.c.l.b16 %v364
        %v439 = vunpack.c.h.b16 %v364
        %v440 = vunpack.c.l.b16 %v365
        %v441 = vunpack.c.h.b16 %v365
        %v442 = vunpack.c.l.b16 %v366
        %v443 = vunpack.c.h.b16 %v366
        %v444 = vunpack.c.l.b16 %v367
        %v445 = vunpack.c.h.b16 %v367
        %v446 = vunpack.c.l.b16 %v368
        %v447 = vunpack.c.h.b16 %v368
        %v448 = vunpack.c.l.b16 %v369
        %v449 = vunpack.c.h.b16 %v369
        %v450 = vunpack.c.l.b16 %v370
        %v451 = vunpack.c.h.b16 %v370
        %v452 = vunpack.c.l.b16 %v371
        %v453 = vunpack.c.h.b16 %v371
        %v454 = vunpack.c.l.b16 %v372
        %v455 = vunpack.c.h.b16 %v372
        %v456 = vunpack.c.l.b16 %v373
        %v457 = vunpack.c.h.b16 %v373
        %v458 = vunpack.c.l.b16 %v374
        %v459 = vunpack.c.h.b16 %v374
        %v460 = vunpack.c.l.b16 %v375
        %v461 = vunpack.c.h.b16 %v375
        %v462 = vunpack.c.l.b16 %v376
        %v463 = vunpack.c.h.b16 %v376
        %v464 = vunpack.c.l.b16 %v377
        %v465 = vunpack.c.h.b16 %v377
        %v466 = vunpack.c.l.b16 %v378
        %v467 = vunpack.c.h.b16 %v378
        %v468 = vunpack.c.l.b16 %v379
        %v469 = vunpack.c.h.b16 %v379
        %v470 = vunpack.c.l.b16 %v380
        %v471 = vunpack.c.h.b16 %v380
        %v472 = vunpack.c.l.b16 %v381
        %v473 = vunpack.c.h.b16 %v381
        %v474 = vunpack.c.l.b16 %v382
        %v475 = vunpack.c.h.b16 %v382
        %v476 = vunpack.c.l.b16 %v383
        %v477 = vunpack.c.h.b16 %v383
        %v478 = vunpack.c.l.b16 %v384
        %v479 = vunpack.c.h.b16 %v384
        %v480 = vunpack.c.l.b16 %v385
        %v481 = vunpack.c.h.b16 %v385
        %v482 = vunpack.c.l.b16 %v386
        %v483 = vunpack.c.h.b16 %v386
        %v484 = vunpack.c.l.b16 %v387
        %v485 = vunpack.c.h.b16 %v387
        %v486 = vunpack.c.l.b16 %v388
        %v487 = vunpack.c.h.b16 %v388
        %v488 = vunpack.c.l.b16 %v389
        %v489 = vunpack.c.h.b16 %v389
        %v490 = vunpack.c.l.b16 %v390
        %v491 = vunpack.c.h.b16 %v390
        %v492 = vunpack.c.l.b16 %v391
        %v493 = vunpack.c.h.b16 %v391
        %v494 = vunpack.c.l.b16 %v392
        %v495 = vunpack.c.h.b16 %v392
        %v496 = vpack.c.b16 %v434, %v432
        %v497 = vpack.c.b16 %v435, %v433
        %v498 = vpack.c.b16 %v438, %v436
        %v499 = vpack.c.b16 %v439, %v437
        %v500 = vpack.c.b16 %v442, %v440
        %v501 = vpack.c.b16 %v443, %v441
        %v502 = vpack.c.b16 %v446, %v444
        %v503 = vpack.c.b16 %v447, %v445
        %v504 = vpack.c.b16 %v450, %v448
        %v505 = vpack.c.b16 %v451, %v449
        %v506 = vpack.c.b16 %v454, %v452
        %v507 = vpack.c.b16 %v455, %v453
        %v508 = vpack.c.b16 %v458, %v456
        %v509 = vpack.c.b16 %v459, %v457
        %v510 = vpack.c.b16 %v462, %v460
        %v511 = vpack.c.b16 %v463, %v461
        %v512 = vpack.c.b16 %v466, %v464
        %v513 = vpack.c.b16 %v467, %v465
        %v514 = vpack.c.b16 %v470, %v468
        %v515 = vpack.c.b16 %v471, %v469
        %v516 = vpack.c.b16 %v474, %v472
        %v517 = vpack.c.b16 %v475, %v473
        %v518 = vpack.c.b16 %v478, %v476
        %v519 = vpack.c.b16 %v479, %v477
        %v520 = vpack.c.b16 %v482, %v480
        %v521 = vpack.c.b16 %v483, %v481
        %v522 = vpack.c.b16 %v486, %v484
        %v523 = vpack.c.b16 %v487, %v485
        %v524 = vpack.c.b16 %v490, %v488
        %v525 = vpack.c.b16 %v491, %v489
        %v526 = vpack.c.b16 %v494, %v492
        %v527 = vpack.c.b16 %v495, %v493
        %560 = vmatpush.bf16.msra.mxu0 %v510
        %561 = vmatpush.bf16.msra.mxu0 %v508
        %562 = vmatpush.bf16.msra.mxu0 %v506
        %563 = vmatpush.bf16.msra.mxu0 %v504
        %564 = vmatpush.bf16.msra.mxu0 %v502
        %565 = vmatpush.bf16.msra.mxu0 %v500
        %566 = vmatpush.bf16.msra.mxu0 %v498
        %567 = vmatpush.bf16.msra.mxu0 %v496
        %568 = vmatmul.bf16.gmra.mxu0 %v396
        %v569 = vpop.f32.mrf.mxu0
        %v570 = vadd.f32 0.0, %v569
        %v571 = vpop.f32.mrf.mxu0
        %572 = vdwg.mxu0
        %573 = vmatpush.bf16.msra.mxu0 %v526
        %574 = vmatpush.bf16.msra.mxu0 %v524
        %575 = vmatpush.bf16.msra.mxu0 %v522
        %576 = vmatpush.bf16.msra.mxu0 %v520
        %577 = vmatpush.bf16.msra.mxu0 %v518
        %578 = vmatpush.bf16.msra.mxu0 %v516
        %579 = vmatpush.bf16.msra.mxu0 %v514
        %580 = vmatpush.bf16.msra.mxu0 %v512
        %581 = vmatmul.bf16.gmra.mxu0 %v397
        %v582 = vpop.f32.mrf.mxu0
        %v583 = vadd.f32 %v570, %v582
        %v584 = vpop.f32.mrf.mxu0
        %585 = vdwg.mxu0
        %586 = vmatpush.bf16.msra.mxu0 %v511
        %587 = vmatpush.bf16.msra.mxu0 %v509
        %588 = vmatpush.bf16.msra.mxu0 %v507
        %589 = vmatpush.bf16.msra.mxu0 %v505
        %590 = vmatpush.bf16.msra.mxu0 %v503
        %591 = vmatpush.bf16.msra.mxu0 %v501
        %592 = vmatpush.bf16.msra.mxu0 %v499
        %593 = vmatpush.bf16.msra.mxu0 %v497
        %594 = vmatmul.bf16.gmra.mxu0 %v396
        %v595 = vpop.f32.mrf.mxu0
        %v596 = vadd.f32 0.0, %v595
        %v597 = vpop.f32.mrf.mxu0
        %598 = vdwg.mxu0
        %599 = vmatpush.bf16.msra.mxu0 %v527
        %600 = vmatpush.bf16.msra.mxu0 %v525
        %601 = vmatpush.bf16.msra.mxu0 %v523
        %602 = vmatpush.bf16.msra.mxu0 %v521
        %603 = vmatpush.bf16.msra.mxu0 %v519
        %604 = vmatpush.bf16.msra.mxu0 %v517
        %605 = vmatpush.bf16.msra.mxu0 %v515
        %606 = vmatpush.bf16.msra.mxu0 %v513
        %607 = vmatmul.bf16.gmra.mxu0 %v397
        %v608 = vpop.f32.mrf.mxu0
        %v609 = vadd.f32 %v596, %v608
        %v610 = vpop.f32.mrf.mxu0
        %611 = vdwg.mxu0
        %v612 = vld [vmem:[%s2] sm:$0xff]
        %614 = vset.pattern.permute.xlu0 0
        %615 = vperm.xlu0 %614, %v612
        %v616 = vpop.permute.xlu0 %615
        %v618 = vmul.f32 %v583, %v616
        %v619 = vmul.f32 %v609, %v616
        %v620 = vld [vmem:[%s3] sm:$0xff]
        %622 = vset.pattern.permute.xlu0 0
        %623 = vperm.xlu0 %622, %v620
        %v624 = vpop.permute.xlu0 %623
        %v626 = vadd.f32 %v618, %v624
        %v627 = vadd.f32 %v619, %v624
        %v628 = vmax.f32 %v626, 0.0
        %v629 = vmax.f32 %v627, 0.0
        %v630 = vpack.c.bf16 %v629, %v628
        %631 = vst [vmem:[%s358] sm:$0xff] %v630
        %s632 = smul.u32 2, %s15
        %p633 = scmp.lt.s32.totalorder %s632, 3
        %s634 = scalar_select %p633, %s632, 3
        %s635 = smul.addr %s634, 4
        %s636 = scalar_lea.vmem %s4, %s635
        // Predicated region
        $region75: #{dla_init_block.3} parent=69 // pred_check
          %p637 = pneg %p122
        $region76: #{dla_init_block.3} parent=69 // pred_check_branch
          %639 = sbr.rel (%p637) target = $region78
        $region77: #{dla_init_block.3} parent=69 // pred_region
          %s640 = smul.u32 2, %s15
        $region78: #{dla_init_block.3} parent=69 // pred_fallthru
          _
      $region70: #{dla_init_block.3} parent=5 // pred_fallthru
        _
      %p641 = scmp.le.s32.totalorder 2, %s10
      // Predicated region
      $region79: #{dla_init_block.3} parent=5 // pred_check
        %p642 = pneg %p641
      $region80: #{dla_init_block.3} parent=5 // pred_check_branch
        %644 = sbr.rel (%p642) target = $region82
      $region81: #{dla_init_block.3} parent=5 // pred_region
        %s645 = ssub.s32 %s10, 2
        // Predicated region
        $region83: #{dla_init_block.3} parent=81 // pred_check
          %p646 = pneg %p128
        $region84: #{dla_init_block.3} parent=81 // pred_check_branch
          %648 = sbr.rel (%p646) target = $region86
        $region85: #{dla_init_block.3} parent=81 // pred_region
          %s649 = smul.u32 2, %s16
          %p650 = scmp.lt.s32.totalorder %s649, 3
          %s651 = scalar_select %p650, %s649, 3
          %s652 = smul.addr %s651, 4
          %s653 = scalar_lea.vmem %s4, %s652
        $region86: #{dla_init_block.3} parent=81 // pred_fallthru
          _
      $region82: #{dla_init_block.3} parent=5 // pred_fallthru
        _
    $region6: #{dla_init_block.3} parent=1 // loop_footer
      %s14 = sadd.s32 1, %s10
    $region7: #{dla_init_block.3} parent=1 // loop_footer_branch
      %9 = sbr.rel target = $region3
    $region8: #{dla_init_block.3} parent=1 // loop_exit
      _

// kernel: dla_init_block.4
$region0: #{dla_init_block.4}
  #allocation0 [shape = 'u32[]', space=smem, size = 0x4, offset = 0x4, fixed_abs, tag = 'smem constant byte address 0x4 - core index']
  #allocation1 [shape = 'u32[72,128]{1,0:T(1,128)}', space=vmem, size = 0x9000, scoped, tag = 'internal scratch']
  %s0 = inlined_call_operand.vmem [shape: bf16[128,512], index: 0, kind: input, shape index: {}]
  %s1 = inlined_call_operand.vmem [shape: bf16[8,128], index: 1, kind: input, shape index: {}]
  %s2 = inlined_call_operand.vmem [shape: f32[8,1], index: 2, kind: input, shape index: {}]
  %s3 = inlined_call_operand.vmem [shape: f32[8,1], index: 3, kind: input, shape index: {}]
  %s4 = inlined_call_operand.vmem [shape: bf16[8,512], index: 4, kind: output, shape index: {}]
  %s5 = sld [smem:[#allocation0]]
  $region87: #{dla_init_block.4} parent=0
    _
  %s7 = ssub.s32 1, %s5
  %s8 = scalar_select 0, %s7, %s5
  $region1: #{dla_init_block.4} parent=0
    #allocation2 [shape = 'u8[131072]{0}', space=vmem, size = 0x20000, scoped, tag = 'input window, operand 0']
    loop: start=0, step=1, limit=4
    $region2: #{dla_init_block.4} parent=1 // loop_pre_header
      _
    $region3: #{dla_init_block.4} parent=1 // loop_header
      %s10 = sphi 0, %s14
      %p11 = scmp.ge.s32.totalorder %s10, 4
      %s20 = sphi 0, %s22
      %s23 = sphi 0, %s20
      %s24 = sphi 0, %s23
      %s40 = sphi 0, %s24
      %s44 = sphi 0, %s44
      %s46 = sphi 0, %s44
      %s47 = sphi 0, %s46
      %s61 = sphi 0, %s47
      %s65 = sphi 0, %s65
      %s67 = sphi 0, %s65
      %s68 = sphi 0, %s67
      %s82 = sphi 0, %s68
      %s86 = sphi 0, %s86
      %s88 = sphi 0, %s86
      %s89 = sphi 0, %s88
      %s103 = sphi 0, %s89
      %s109 = sphi 0, %s111
      %s112 = sphi 0, %s109
      %s113 = sphi 0, %s112
      %s129 = sphi 0, %s113
    $region4: #{dla_init_block.4} parent=1 // loop_header_branch
      %13 = sbr.rel (%p11) target = $region8
    $region5: #{dla_init_block.4} parent=1 // loop_body
      %s15 = ssub.s32 %s10, 1
      %s16 = ssub.s32 %s10, 2
      %s17 = sadd.s32 %s10, 1
      %s18 = ssub.s32 %s10, %s17
      %p19 = scmp.eq.s32.totalorder %s18, 0
      %s21 = sadd.s32 %s20, 1
      %s22 = scalar_select %p19, %s20, %s21
      %p25 = pneg %p19
      %p26 = scmp.eq.s32.totalorder %s10, 1
      %p27 = por %p25, %p26
      %p28 = scmp.ne.s32.totalorder %s20, %s23
      %p29 = scmp.eq.s32.totalorder %s10, 0
      %p30 = por %p28, %p29
      %p31 = scmp.ne.s32.totalorder %s20, %s23
      %p32 = scmp.eq.s32.totalorder %s15, 1
      %p33 = por %p31, %p32
      %p34 = scmp.ne.s32.totalorder %s23, %s24
      %p35 = scmp.eq.s32.totalorder %s15, 0
      %p36 = por %p34, %p35
      %p37 = scmp.ne.s32.totalorder %s23, %s24
      %p38 = scmp.eq.s32.totalorder %s16, 1
      %p39 = por %p37, %p38
      %p41 = scmp.ne.s32.totalorder %s24, %s40
      %p42 = scmp.eq.s32.totalorder %s16, 0
      %p43 = por %p41, %p42
      %s45 = sadd.s32 %s44, 1
      %p48 = scmp.eq.s32.totalorder %s10, 1
      %p49 = scmp.ne.s32.totalorder %s44, %s46
      %p50 = scmp.eq.s32.totalorder %s10, 0
      %p51 = por %p49, %p50
      %p52 = scmp.ne.s32.totalorder %s44, %s46
      %p53 = scmp.eq.s32.totalorder %s15, 1
      %p54 = por %p52, %p53
      %p55 = scmp.ne.s32.totalorder %s46, %s47
      %p56 = scmp.eq.s32.totalorder %s15, 0
      %p57 = por %p55, %p56
      %p58 = scmp.ne.s32.totalorder %s46, %s47
      %p59 = scmp.eq.s32.totalorder %s16, 1
      %p60 = por %p58, %p59
      %p62 = scmp.ne.s32.totalorder %s47, %s61
      %p63 = scmp.eq.s32.totalorder %s16, 0
      %p64 = por %p62, %p63
      %s66 = sadd.s32 %s65, 1
      %p69 = scmp.eq.s32.totalorder %s10, 1
      %p70 = scmp.ne.s32.totalorder %s65, %s67
      %p71 = scmp.eq.s32.totalorder %s10, 0
      %p72 = por %p70, %p71
      %p73 = scmp.ne.s32.totalorder %s65, %s67
      %p74 = scmp.eq.s32.totalorder %s15, 1
      %p75 = por %p73, %p74
      %p76 = scmp.ne.s32.totalorder %s67, %s68
      %p77 = scmp.eq.s32.totalorder %s15, 0
      %p78 = por %p76, %p77
      %p79 = scmp.ne.s32.totalorder %s67, %s68
      %p80 = scmp.eq.s32.totalorder %s16, 1
      %p81 = por %p79, %p80
      %p83 = scmp.ne.s32.totalorder %s68, %s82
      %p84 = scmp.eq.s32.totalorder %s16, 0
      %p85 = por %p83, %p84
      %s87 = sadd.s32 %s86, 1
      %p90 = scmp.eq.s32.totalorder %s10, 1
      %p91 = scmp.ne.s32.totalorder %s86, %s88
      %p92 = scmp.eq.s32.totalorder %s10, 0
      %p93 = por %p91, %p92
      %p94 = scmp.ne.s32.totalorder %s86, %s88
      %p95 = scmp.eq.s32.totalorder %s15, 1
      %p96 = por %p94, %p95
      %p97 = scmp.ne.s32.totalorder %s88, %s89
      %p98 = scmp.eq.s32.totalorder %s15, 0
      %p99 = por %p97, %p98
      %p100 = scmp.ne.s32.totalorder %s88, %s89
      %p101 = scmp.eq.s32.totalorder %s16, 1
      %p102 = por %p100, %p101
      %p104 = scmp.ne.s32.totalorder %s89, %s103
      %p105 = scmp.eq.s32.totalorder %s16, 0
      %p106 = por %p104, %p105
      %s107 = ssub.s32 %s10, %s17
      %p108 = scmp.eq.s32.totalorder %s107, 0
      %s110 = sadd.s32 %s109, 1
      %s111 = scalar_select %p108, %s109, %s110
      %p114 = pneg %p108
      %p115 = scmp.eq.s32.totalorder %s10, 1
      %p116 = por %p114, %p115
      %p117 = scmp.ne.s32.totalorder %s109, %s112
      %p118 = scmp.eq.s32.totalorder %s10, 0
      %p119 = por %p117, %p118
      %p120 = scmp.ne.s32.totalorder %s109, %s112
      %p121 = scmp.eq.s32.totalorder %s15, 1
      %p122 = por %p120, %p121
      %p123 = scmp.ne.s32.totalorder %s112, %s113
      %p124 = scmp.eq.s32.totalorder %s15, 0
      %p125 = por %p123, %p124
      %p126 = scmp.ne.s32.totalorder %s112, %s113
      %p127 = scmp.eq.s32.totalorder %s16, 1
      %p128 = por %p126, %p127
      %p130 = scmp.ne.s32.totalorder %s113, %s129
      %p131 = scmp.eq.s32.totalorder %s16, 0
      %p132 = por %p130, %p131
      %p133 = scmp.le.s32.totalorder 1, %s10
      %p134 = scmp.lt.s32.totalorder %s10, 3
      %p135 = pnand %p133, %p134
      %p136 = pneg %p135
      // Predicated region
      $region9: #{dla_init_block.4} parent=5 // pred_check
        _
      $region10: #{dla_init_block.4} parent=5 // pred_check_branch
        %138 = sbr.rel (%p135) target = $region12
      $region11: #{dla_init_block.4} parent=5 // pred_region
        %s139 = ssub.s32 %s10, 1
        // Predicated region
        $region13: #{dla_init_block.4} parent=11 // pred_check
          %p140 = pneg %p57
        $region14: #{dla_init_block.4} parent=11 // pred_check_branch
          %142 = sbr.rel (%p140) target = $region16
        $region15: #{dla_init_block.4} parent=11 // pred_region
          _
        $region16: #{dla_init_block.4} parent=11 // pred_fallthru
          _
        // Predicated region
        $region17: #{dla_init_block.4} parent=11 // pred_check
          %p143 = pneg %p78
        $region18: #{dla_init_block.4} parent=11 // pred_check_branch
          %145 = sbr.rel (%p143) target = $region20
        $region19: #{dla_init_block.4} parent=11 // pred_region
          _
        $region20: #{dla_init_block.4} parent=11 // pred_fallthru
          _
        // Predicated region
        $region21: #{dla_init_block.4} parent=11 // pred_check
          %p146 = pneg %p99
        $region22: #{dla_init_block.4} parent=11 // pred_check_branch
          %148 = sbr.rel (%p146) target = $region24
        $region23: #{dla_init_block.4} parent=11 // pred_region
          _
        $region24: #{dla_init_block.4} parent=11 // pred_fallthru
          _
      $region12: #{dla_init_block.4} parent=5 // pred_fallthru
        _
      %p149 = scmp.lt.s32.totalorder %s10, 2
      // Predicated region
      $region25: #{dla_init_block.4} parent=5 // pred_check
        %p150 = pneg %p149
      $region26: #{dla_init_block.4} parent=5 // pred_check_branch
        %152 = sbr.rel (%p150) target = $region28
      $region27: #{dla_init_block.4} parent=5 // pred_region
        // Predicated region
        $region29: #{dla_init_block.4} parent=27 // pred_check
          %p153 = pneg %p30
        $region30: #{dla_init_block.4} parent=27 // pred_check_branch
          %155 = sbr.rel (%p153) target = $region32
        $region31: #{dla_init_block.4} parent=27 // pred_region
          %s156 = sand.u32 %s20, 1
          %s157 = sand.u32 %s20, 1
          %s158 = smul.addr %s157, 128
          %s159 = scalar_lea.vmem [#allocation2], %s158
          %s160 = smul.u32 2, %s10
          %s161 = smul.addr %s160, 4
          %s162 = scalar_lea.vmem %s0, %s161
          // Predicated region
          $region33: #{dla_init_block.4} parent=31 // pred_check
            _
          $region34: #{dla_init_block.4} parent=31 // pred_check_branch
            %164 = sbr.rel (0) target = $region36
          $region35: #{dla_init_block.4} parent=31 // pred_region
            // Predicated region
            $region37: #{dla_init_block.4} parent=35 // pred_check
              _
            $region38: #{dla_init_block.4} parent=35 // pred_check_branch
              %166 = sbr.rel (0) target = $region40
            $region39: #{dla_init_block.4} parent=35 // pred_region
              // Predicated region
              $region52: #{dla_init_block.4} parent=39 // pred_check
                _
              $region53: #{dla_init_block.4} parent=39 // pred_check_branch
                %212 = sbr.rel (0) target = $region55
              $region54: #{dla_init_block.4} parent=39 // pred_region
                loop: start=0, step=1, limit=1
                $region56: #{dla_init_block.4} parent=54 // loop_pre_header
                  _
                $region57: #{dla_init_block.4} parent=54 // loop_header
                  %s214 = sphi 0, %s218
                  %p215 = scmp.ge.s32.totalorder %s214, 1
                  %s219 = sphi %s162, %s162
                  %s220 = sphi %s159, %s159
                $region58: #{dla_init_block.4} parent=54 // loop_header_branch
                  %217 = sbr.rel (%p215) target = $region62
                $region59: #{dla_init_block.4} parent=54 // loop_body
                  %v221 = vld [vmem:[%s219] sm:$0xff]
                  %222 = vst [vmem:[%s220] sm:$0xff] %v221
                  %v223 = vld [vmem:[%s219 + $0x10] sm:$0xff]
                  %224 = vst [vmem:[%s220 + $0x8] sm:$0xff] %v223
                  %v225 = vld [vmem:[%s219 + $0x20] sm:$0xff]
                  %226 = vst [vmem:[%s220 + $0x10] sm:$0xff] %v225
                  %v227 = vld [vmem:[%s219 + $0x30] sm:$0xff]
                  %228 = vst [vmem:[%s220 + $0x18] sm:$0xff] %v227
                  %v229 = vld [vmem:[%s219 + $0x40] sm:$0xff]
                  %230 = vst [vmem:[%s220 + $0x20] sm:$0xff] %v229
                  %v231 = vld [vmem:[%s219 + $0x50] sm:$0xff]
                  %232 = vst [vmem:[%s220 + $0x28] sm:$0xff] %v231
                  %v233 = vld [vmem:[%s219 + $0x60] sm:$0xff]
                  %234 = vst [vmem:[%s220 + $0x30] sm:$0xff] %v233
                  %v235 = vld [vmem:[%s219 + $0x70] sm:$0xff]
                  %236 = vst [vmem:[%s220 + $0x38] sm:$0xff] %v235
                  %v237 = vld [vmem:[%s219 + $0x80] sm:$0xff]
                  %238 = vst [vmem:[%s220 + $0x40] sm:$0xff] %v237
                  %v239 = vld [vmem:[%s219 + $0x90] sm:$0xff]
                  %240 = vst [vmem:[%s220 + $0x48] sm:$0xff] %v239
                  %v241 = vld [vmem:[%s219 + $0xa0] sm:$0xff]
                  %242 = vst [vmem:[%s220 + $0x50] sm:$0xff] %v241
                  %v243 = vld [vmem:[%s219 + $0xb0] sm:$0xff]
                  %244 = vst [vmem:[%s220 + $0x58] sm:$0xff] %v243
                  %v245 = vld [vmem:[%s219 + $0xc0] sm:$0xff]
                  %246 = vst [vmem:[%s220 + $0x60] sm:$0xff] %v245
                  %v247 = vld [vmem:[%s219 + $0xd0] sm:$0xff]
                  %248 = vst [vmem:[%s220 + $0x68] sm:$0xff] %v247
                  %v249 = vld [vmem:[%s219 + $0xe0] sm:$0xff]
                  %250 = vst [vmem:[%s220 + $0x70] sm:$0xff] %v249
                  %v251 = vld [vmem:[%s219 + $0xf0] sm:$0xff]
                  %252 = vst [vmem:[%s220 + $0x78] sm:$0xff] %v251
                $region60: #{dla_init_block.4} parent=54 // loop_footer
                  %s218 = sadd.s32 1, %s214
                $region61: #{dla_init_block.4} parent=54 // loop_footer_branch
                  %213 = sbr.rel target = $region57
                $region62: #{dla_init_block.4} parent=54 // loop_exit
                  _
              $region55: #{dla_init_block.4} parent=39 // pred_fallthru
                _
              // Predicated region
              $region63: #{dla_init_block.4} parent=39 // pred_check
                _
              $region64: #{dla_init_block.4} parent=39 // pred_check_branch
                %254 = sbr.rel target = $region66
              $region65: #{dla_init_block.4} parent=39 // pred_region
                _
              $region66: #{dla_init_block.4} parent=39 // pred_fallthru
                _
            $region40: #{dla_init_block.4} parent=35 // pred_fallthru
              _
            // Predicated region
            $region41: #{dla_init_block.4} parent=35 // pred_check
              _
            $region42: #{dla_init_block.4} parent=35 // pred_check_branch
              %168 = sbr.rel target = $region44
            $region43: #{dla_init_block.4} parent=35 // pred_region
              %s170 = ssub.s32 256, 1
              loop: start=0, step=1, limit=1
              $region45: #{dla_init_block.4} parent=43 // loop_pre_header
                _
              $region46: #{dla_init_block.4} parent=43 // loop_header
                %s172 = sphi 0, %s176
                %p173 = scmp.ge.s32.totalorder %s172, 1
                %s177 = sphi %s162, %s162
                %s178 = sphi %s159, %s159
              $region47: #{dla_init_block.4} parent=43 // loop_header_branch
                %175 = sbr.rel (%p173) target = $region51
              $region48: #{dla_init_block.4} parent=43 // loop_body
                %v179 = vld [vmem:[%s177] sm:%s170]
                %180 = vst [vmem:[%s178] sm:%s170] %v179
                %v181 = vld [vmem:[%s177 + $0x10] sm:%s170]
                %182 = vst [vmem:[%s178 + $0x8] sm:%s170] %v181
                %v183 = vld [vmem:[%s177 + $0x20] sm:%s170]
                %184 = vst [vmem:[%s178 + $0x10] sm:%s170] %v183
                %v185 = vld [vmem:[%s177 + $0x30] sm:%s170]
                %186 = vst [vmem:[%s178 + $0x18] sm:%s170] %v185
                %v187 = vld [vmem:[%s177 + $0x40] sm:%s170]
                %188 = vst [vmem:[%s178 + $0x20] sm:%s170] %v187
                %v189 = vld [vmem:[%s177 + $0x50] sm:%s170]
                %190 = vst [vmem:[%s178 + $0x28] sm:%s170] %v189
                %v191 = vld [vmem:[%s177 + $0x60] sm:%s170]
                %192 = vst [vmem:[%s178 + $0x30] sm:%s170] %v191
                %v193 = vld [vmem:[%s177 + $0x70] sm:%s170]
                %194 = vst [vmem:[%s178 + $0x38] sm:%s170] %v193
                %v195 = vld [vmem:[%s177 + $0x80] sm:%s170]
                %196 = vst [vmem:[%s178 + $0x40] sm:%s170] %v195
                %v197 = vld [vmem:[%s177 + $0x90] sm:%s170]
                %198 = vst [vmem:[%s178 + $0x48] sm:%s170] %v197
                %v199 = vld [vmem:[%s177 + $0xa0] sm:%s170]
                %200 = vst [vmem:[%s178 + $0x50] sm:%s170] %v199
                %v201 = vld [vmem:[%s177 + $0xb0] sm:%s170]
                %202 = vst [vmem:[%s178 + $0x58] sm:%s170] %v201
                %v203 = vld [vmem:[%s177 + $0xc0] sm:%s170]
                %204 = vst [vmem:[%s178 + $0x60] sm:%s170] %v203
                %v205 = vld [vmem:[%s177 + $0xd0] sm:%s170]
                %206 = vst [vmem:[%s178 + $0x68] sm:%s170] %v205
                %v207 = vld [vmem:[%s177 + $0xe0] sm:%s170]
                %208 = vst [vmem:[%s178 + $0x70] sm:%s170] %v207
                %v209 = vld [vmem:[%s177 + $0xf0] sm:%s170]
                %210 = vst [vmem:[%s178 + $0x78] sm:%s170] %v209
              $region49: #{dla_init_block.4} parent=43 // loop_footer
                %s176 = sadd.s32 1, %s172
              $region50: #{dla_init_block.4} parent=43 // loop_footer_branch
                %171 = sbr.rel target = $region46
              $region51: #{dla_init_block.4} parent=43 // loop_exit
                _
            $region44: #{dla_init_block.4} parent=35 // pred_fallthru
              _
          $region36: #{dla_init_block.4} parent=31 // pred_fallthru
            _
          %255 = vnop
        $region32: #{dla_init_block.4} parent=27 // pred_fallthru
          _
      $region28: #{dla_init_block.4} parent=5 // pred_fallthru
        _
      %p256 = scmp.le.s32.totalorder 1, %s10
      %p257 = scmp.lt.s32.totalorder %s10, 3
      %p258 = pnand %p256, %p257
      %p259 = pneg %p258
      // Predicated region
      $region67: #{dla_init_block.4} parent=5 // pred_check
        _
      $region68: #{dla_init_block.4} parent=5 // pred_check_branch
        %261 = sbr.rel (%p258) target = $region70
      $region69: #{dla_init_block.4} parent=5 // pred_region
        %s262 = ssub.s32 %s10, 1
        %s263 = sand.u32 %s23, 1
        %s264 = sand.u32 %s23, 1
        %s265 = smul.addr %s264, 128
        %s266 = scalar_lea.vmem [#allocation2], %s265
        // Predicated region
        $region71: #{dla_init_block.4} parent=69 // pred_check
          %p267 = pneg %p36
        $region72: #{dla_init_block.4} parent=69 // pred_check_branch
          %269 = sbr.rel (%p267) target = $region74
        $region73: #{dla_init_block.4} parent=69 // pred_region
          _
        $region74: #{dla_init_block.4} parent=69 // pred_fallthru
          _
        %s270 = sand.u32 %s23, 1
        %s271 = sand.u32 %s23, 1
        %s272 = smul.addr %s271, 128
        %s273 = scalar_lea.vmem [#allocation2], %s272
        %p274 = pneg %p36
        %p275 = pneg %p33
        %p276 = pneg %p57
        %p277 = pneg %p54
        %p278 = pneg %p78
        %p279 = pneg %p75
        %p280 = pneg %p99
        %p281 = pneg %p96
        %p282 = pneg %p125
        %p283 = pneg %p122
        %s284 = smul.u32 2, %s15
        %p285 = scmp.lt.s32.totalorder %s284, 3
        %s286 = scalar_select %p285, %s284, 3
        %s287 = smul.addr %s286, 4
        %s288 = scalar_lea.vmem %s4, %s287
        %s289 = smul.u32 2, %s15
        %s290 = smul.u32 2, %s15
        %p291 = scmp.lt.s32.totalorder %s290, 3
        %s292 = scalar_select %p291, %s290, 3
        %s293 = smul.addr %s292, 4
        %s294 = scalar_lea.vmem %s4, %s293
        %s295 = smul.u32 2, %s15
        %v296 = vld [vmem:[%s1] sm:$0xf]
        %v297 = vld [vmem:[%s266] sm:$0xff]
        %v298 = vld [vmem:[%s266 + $0x8] sm:$0xff]
        %v299 = vld [vmem:[%s266 + $0x10] sm:$0xff]
        %v300 = vld [vmem:[%s266 + $0x18] sm:$0xff]
        %v301 = vld [vmem:[%s266 + $0x20] sm:$0xff]
        %v302 = vld [vmem:[%s266 + $0x28] sm:$0xff]
        %v303 = vld [vmem:[%s266 + $0x30] sm:$0xff]
        %v304 = vld [vmem:[%s266 + $0x38] sm:$0xff]
        %v305 = vld [vmem:[%s266 + $0x40] sm:$0xff]
        %v306 = vld [vmem:[%s266 + $0x48] sm:$0xff]
        %v307 = vld [vmem:[%s266 + $0x50] sm:$0xff]
        %v308 = vld [vmem:[%s266 + $0x58] sm:$0xff]
        %v309 = vld [vmem:[%s266 + $0x60] sm:$0xff]
        %v310 = vld [vmem:[%s266 + $0x68] sm:$0xff]
        %v311 = vld [vmem:[%s266 + $0x70] sm:$0xff]
        %v312 = vld [vmem:[%s266 + $0x78] sm:$0xff]
        %v329 = vunpack.c.l.b16 %v297
        %v330 = vunpack.c.h.b16 %v297
        %v331 = vunpack.c.l.b16 %v298
        %v332 = vunpack.c.h.b16 %v298
        %v333 = vunpack.c.l.b16 %v299
        %v334 = vunpack.c.h.b16 %v299
        %v335 = vunpack.c.l.b16 %v300
        %v336 = vunpack.c.h.b16 %v300
        %v337 = vunpack.c.l.b16 %v301
        %v338 = vunpack.c.h.b16 %v301
        %v339 = vunpack.c.l.b16 %v302
        %v340 = vunpack.c.h.b16 %v302
        %v341 = vunpack.c.l.b16 %v303
        %v342 = vunpack.c.h.b16 %v303
        %v343 = vunpack.c.l.b16 %v304
        %v344 = vunpack.c.h.b16 %v304
        %v345 = vunpack.c.l.b16 %v305
        %v346 = vunpack.c.h.b16 %v305
        %v347 = vunpack.c.l.b16 %v306
        %v348 = vunpack.c.h.b16 %v306
        %v349 = vunpack.c.l.b16 %v307
        %v350 = vunpack.c.h.b16 %v307
        %v351 = vunpack.c.l.b16 %v308
        %v352 = vunpack.c.h.b16 %v308
        %v353 = vunpack.c.l.b16 %v309
        %v354 = vunpack.c.h.b16 %v309
        %v355 = vunpack.c.l.b16 %v310
        %v356 = vunpack.c.h.b16 %v310
        %v357 = vunpack.c.l.b16 %v311
        %v358 = vunpack.c.h.b16 %v311
        %v359 = vunpack.c.l.b16 %v312
        %v360 = vunpack.c.h.b16 %v312
        %v361 = vpack.c.b16 %v331, %v329
        %v362 = vpack.c.b16 %v332, %v330
        %v363 = vpack.c.b16 %v335, %v333
        %v364 = vpack.c.b16 %v336, %v334
        %v365 = vpack.c.b16 %v339, %v337
        %v366 = vpack.c.b16 %v340, %v338
        %v367 = vpack.c.b16 %v343, %v341
        %v368 = vpack.c.b16 %v344, %v342
        %v369 = vpack.c.b16 %v347, %v345
        %v370 = vpack.c.b16 %v348, %v346
        %v371 = vpack.c.b16 %v351, %v349
        %v372 = vpack.c.b16 %v352, %v350
        %v373 = vpack.c.b16 %v355, %v353
        %v374 = vpack.c.b16 %v356, %v354
        %v375 = vpack.c.b16 %v359, %v357
        %v376 = vpack.c.b16 %v360, %v358
        %393 = vmatpush.bf16.msra.mxu0 %v375
        %394 = vmatpush.bf16.msra.mxu0 %v373
        %395 = vmatpush.bf16.msra.mxu0 %v371
        %396 = vmatpush.bf16.msra.mxu0 %v369
        %397 = vmatpush.bf16.msra.mxu0 %v367
        %398 = vmatpush.bf16.msra.mxu0 %v365
        %399 = vmatpush.bf16.msra.mxu0 %v363
        %400 = vmatpush.bf16.msra.mxu0 %v361
        %401 = vmatmul.bf16.gmra.mxu0 %v296
        %v402 = vpop.f32.mrf.mxu0
        %v403 = vadd.f32 0.0, %v402
        %v404 = vpop.f32.mrf.mxu0
        %405 = vdwg.mxu0
        %406 = vmatpush.bf16.msra.mxu0 %v376
        %407 = vmatpush.bf16.msra.mxu0 %v374
        %408 = vmatpush.bf16.msra.mxu0 %v372
        %409 = vmatpush.bf16.msra.mxu0 %v370
        %410 = vmatpush.bf16.msra.mxu0 %v368
        %411 = vmatpush.bf16.msra.mxu0 %v366
        %412 = vmatpush.bf16.msra.mxu0 %v364
        %413 = vmatpush.bf16.msra.mxu0 %v362
        %414 = vmatmul.bf16.gmra.mxu0 %v296
        %v415 = vpop.f32.mrf.mxu0
        %v416 = vadd.f32 0.0, %v415
        %v417 = vpop.f32.mrf.mxu0
        %418 = vdwg.mxu0
        %v419 = vld [vmem:[%s2] sm:$0xff]
        %421 = vset.pattern.permute.xlu0 0
        %422 = vperm.xlu0 %421, %v419
        %v423 = vpop.permute.xlu0 %422
        %v425 = vmul.f32 %v403, %v423
        %v426 = vmul.f32 %v416, %v423
        %v427 = vld [vmem:[%s3] sm:$0xff]
        %429 = vset.pattern.permute.xlu0 0
        %430 = vperm.xlu0 %429, %v427
        %v431 = vpop.permute.xlu0 %430
        %v433 = vadd.f32 %v425, %v431
        %v434 = vadd.f32 %v426, %v431
        %v435 = vmax.f32 %v433, 0.0
        %v436 = vmax.f32 %v434, 0.0
        %v437 = vpack.c.bf16 %v436, %v435
        %438 = vst [vmem:[%s294] sm:$0xff] %v437
        %s439 = smul.u32 2, %s15
        %p440 = scmp.lt.s32.totalorder %s439, 3
        %s441 = scalar_select %p440, %s439, 3
        %s442 = smul.addr %s441, 4
        %s443 = scalar_lea.vmem %s4, %s442
        // Predicated region
        $region75: #{dla_init_block.4} parent=69 // pred_check
          %p444 = pneg %p122
        $region76: #{dla_init_block.4} parent=69 // pred_check_branch
          %446 = sbr.rel (%p444) target = $region78
        $region77: #{dla_init_block.4} parent=69 // pred_region
          %s447 = smul.u32 2, %s15
        $region78: #{dla_init_block.4} parent=69 // pred_fallthru
          _
      $region70: #{dla_init_block.4} parent=5 // pred_fallthru
        _
      %p448 = scmp.le.s32.totalorder 2, %s10
      // Predicated region
      $region79: #{dla_init_block.4} parent=5 // pred_check
        %p449 = pneg %p448
      $region80: #{dla_init_block.4} parent=5 // pred_check_branch
        %451 = sbr.rel (%p449) target = $region82
      $region81: #{dla_init_block.4} parent=5 // pred_region
        %s452 = ssub.s32 %s10, 2
        // Predicated region
        $region83: #{dla_init_block.4} parent=81 // pred_check
          %p453 = pneg %p128
        $region84: #{dla_init_block.4} parent=81 // pred_check_branch
          %455 = sbr.rel (%p453) target = $region86
        $region85: #{dla_init_block.4} parent=81 // pred_region
          %s456 = smul.u32 2, %s16
          %p457 = scmp.lt.s32.totalorder %s456, 3
          %s458 = scalar_select %p457, %s456, 3
          %s459 = smul.addr %s458, 4
          %s460 = scalar_lea.vmem %s4, %s459
        $region86: #{dla_init_block.4} parent=81 // pred_fallthru
          _
      $region82: #{dla_init_block.4} parent=5 // pred_fallthru
        _
    $region6: #{dla_init_block.4} parent=1 // loop_footer
      %s14 = sadd.s32 1, %s10
    $region7: #{dla_init_block.4} parent=1 // loop_footer_branch
      %9 = sbr.rel target = $region3
    $region8: #{dla_init_block.4} parent=1 // loop_exit
      _

// kernel: dla_init_block.5
$region0: #{dla_init_block.5}
  #allocation0 [shape = 'u32[]', space=smem, size = 0x4, offset = 0x4, fixed_abs, tag = 'smem constant byte address 0x4 - core index']
  #allocation1 [shape = 'u32[72,128]{1,0:T(1,128)}', space=vmem, size = 0x9000, scoped, tag = 'internal scratch']
  %s0 = inlined_call_operand.vmem [shape: bf16[128,128], index: 0, kind: input, shape index: {}]
  %s1 = inlined_call_operand.vmem [shape: bf16[8,128], index: 1, kind: input, shape index: {}]
  %s2 = inlined_call_operand.vmem [shape: f32[8,1], index: 2, kind: input, shape index: {}]
  %s3 = inlined_call_operand.vmem [shape: f32[8,1], index: 3, kind: input, shape index: {}]
  %s4 = inlined_call_operand.vmem [shape: f32[8,128], index: 4, kind: output, shape index: {}]
  %s5 = sld [smem:[#allocation0]]
  $region26: #{dla_init_block.5} parent=0
    _
  %s7 = ssub.s32 1, %s5
  %s8 = scalar_select 0, %s7, %s5
  // Predicated region
  $region2: #{dla_init_block.5} parent=0 // pred_check
    _
  $region3: #{dla_init_block.5} parent=0 // pred_check_branch
    %10 = sbr.rel (0) target = $region5
  $region4: #{dla_init_block.5} parent=0 // pred_region
    _
  $region5: #{dla_init_block.5} parent=0 // pred_fallthru
    _
  // Predicated region
  $region6: #{dla_init_block.5} parent=0 // pred_check
    _
  $region7: #{dla_init_block.5} parent=0 // pred_check_branch
    %12 = sbr.rel (0) target = $region9
  $region8: #{dla_init_block.5} parent=0 // pred_region
    _
  $region9: #{dla_init_block.5} parent=0 // pred_fallthru
    _
  // Predicated region
  $region10: #{dla_init_block.5} parent=0 // pred_check
    _
  $region11: #{dla_init_block.5} parent=0 // pred_check_branch
    %14 = sbr.rel (0) target = $region13
  $region12: #{dla_init_block.5} parent=0 // pred_region
    _
  $region13: #{dla_init_block.5} parent=0 // pred_fallthru
    _
  // Predicated region
  $region14: #{dla_init_block.5} parent=0 // pred_check
    _
  $region15: #{dla_init_block.5} parent=0 // pred_check_branch
    %16 = sbr.rel (0) target = $region17
  $region16: #{dla_init_block.5} parent=0 // pred_region
    _
  $region17: #{dla_init_block.5} parent=0 // pred_fallthru
    _
  %v17 = vld [vmem:[%s1] sm:$0xf]
  %v18 = vld [vmem:[%s0] sm:$0xf]
  %v19 = vld [vmem:[%s0 + $0x4] sm:$0xf]
  %v20 = vld [vmem:[%s0 + $0x8] sm:$0xf]
  %v21 = vld [vmem:[%s0 + $0xc] sm:$0xf]
  %v22 = vld [vmem:[%s0 + $0x10] sm:$0xf]
  %v23 = vld [vmem:[%s0 + $0x14] sm:$0xf]
  %v24 = vld [vmem:[%s0 + $0x18] sm:$0xf]
  %v25 = vld [vmem:[%s0 + $0x1c] sm:$0xf]
  %v26 = vld [vmem:[%s0 + $0x20] sm:$0xf]
  %v27 = vld [vmem:[%s0 + $0x24] sm:$0xf]
  %v28 = vld [vmem:[%s0 + $0x28] sm:$0xf]
  %v29 = vld [vmem:[%s0 + $0x2c] sm:$0xf]
  %v30 = vld [vmem:[%s0 + $0x30] sm:$0xf]
  %v31 = vld [vmem:[%s0 + $0x34] sm:$0xf]
  %v32 = vld [vmem:[%s0 + $0x38] sm:$0xf]
  %v33 = vld [vmem:[%s0 + $0x3c] sm:$0xf]
  %v50 = vunpack.c.l.b16 %v18
  %v51 = vunpack.c.l.b16 %v19
  %v52 = vunpack.c.l.b16 %v20
  %v53 = vunpack.c.l.b16 %v21
  %v54 = vunpack.c.l.b16 %v22
  %v55 = vunpack.c.l.b16 %v23
  %v56 = vunpack.c.l.b16 %v24
  %v57 = vunpack.c.l.b16 %v25
  %v58 = vunpack.c.l.b16 %v26
  %v59 = vunpack.c.l.b16 %v27
  %v60 = vunpack.c.l.b16 %v28
  %v61 = vunpack.c.l.b16 %v29
  %v62 = vunpack.c.l.b16 %v30
  %v63 = vunpack.c.l.b16 %v31
  %v64 = vunpack.c.l.b16 %v32
  %v65 = vunpack.c.l.b16 %v33
  %v66 = vpack.c.b16 %v51, %v50
  %v67 = vpack.c.b16 %v53, %v52
  %v68 = vpack.c.b16 %v55, %v54
  %v69 = vpack.c.b16 %v57, %v56
  %v70 = vpack.c.b16 %v59, %v58
  %v71 = vpack.c.b16 %v61, %v60
  %v72 = vpack.c.b16 %v63, %v62
  %v73 = vpack.c.b16 %v65, %v64
  %82 = vmatpush.bf16.msra.mxu0 %v73
  %83 = vmatpush.bf16.msra.mxu0 %v72
  %84 = vmatpush.bf16.msra.mxu0 %v71
  %85 = vmatpush.bf16.msra.mxu0 %v70
  %86 = vmatpush.bf16.msra.mxu0 %v69
  %87 = vmatpush.bf16.msra.mxu0 %v68
  %88 = vmatpush.bf16.msra.mxu0 %v67
  %89 = vmatpush.bf16.msra.mxu0 %v66
  %90 = vmatmul.bf16.gmra.mxu0 %v17
  %v91 = vpop.f32.mrf.mxu0
  %v92 = vadd.f32 0.0, %v91
  %v93 = vpop.f32.mrf.mxu0
  %94 = vdwg.mxu0
  %v95 = vld [vmem:[%s2] sm:$0xff]
  %97 = vset.pattern.permute.xlu0 0
  %98 = vperm.xlu0 %97, %v95
  %v99 = vpop.permute.xlu0 %98
  %v101 = vmul.f32 %v92, %v99
  %v102 = vld [vmem:[%s3] sm:$0xff]
  %104 = vset.pattern.permute.xlu0 0
  %105 = vperm.xlu0 %104, %v102
  %v106 = vpop.permute.xlu0 %105
  %v108 = vadd.f32 %v101, %v106
  %v109 = vmax.f32 %v108, 0.0
  %110 = vst [vmem:[%s4] sm:$0xff] %v109
  // Predicated region
  $region18: #{dla_init_block.5} parent=0 // pred_check
    _
  $region19: #{dla_init_block.5} parent=0 // pred_check_branch
    %112 = sbr.rel (0) target = $region21
  $region20: #{dla_init_block.5} parent=0 // pred_region
    _
  $region21: #{dla_init_block.5} parent=0 // pred_fallthru
    _
  // Predicated region
  $region22: #{dla_init_block.5} parent=0 // pred_check
    _
  $region23: #{dla_init_block.5} parent=0 // pred_check_branch
    %114 = sbr.rel (0) target = $region25
  $region24: #{dla_init_block.5} parent=0 // pred_region
    _
  $region25: #{dla_init_block.5} parent=0 // pred_fallthru
    _

</llo_original>
